<compile_context>
chip_gen: v7x
topology: tpu7x:2x2x1
jax: 0.10.0
libtpu: 0.0.40
codegen_flags: <defaults>
</compile_context>

<pallas_src>
import jax
import jax.numpy as jnp
from jax.experimental import pallas as pl
from jax.experimental.pallas import tpu as pltpu

LATENT_DIMS = 2
HIDDEN = 512
OUT = 784                       # 28 * 28
OUT_PAD = 896                   # 7 * 128, lane-dense padded output width


def decoder_kernel(z_ref, w1_ref, b1_ref, w2_ref, b2_ref, o_ref):
    # z_ref: (TB, LATENT_DIMS), w1_ref: (LATENT_DIMS, HIDDEN), b1_ref: (1, HIDDEN)
    # w2_ref: (HIDDEN, OUT_PAD), b2_ref: (1, OUT_PAD), o_ref: (TB, OUT_PAD)
    z = z_ref[...]

    # Layer 1: K=2 contraction -> VPU broadcast-FMAs (avoids a >98%-zero-padded MXU matmul).
    h = b1_ref[...]                                   # (1, HIDDEN), broadcasts up
    for k in range(LATENT_DIMS):                      # static unroll (LATENT_DIMS == 2)
        h = h + z[:, k:k + 1] * w1_ref[k:k + 1, :]    # (TB,1) * (1,HIDDEN) -> (TB,HIDDEN)
    h = jnp.maximum(h, 0.0)                           # ReLU on VPU

    # Layer 2: (TB,512) @ (512,896) on the MXU, f32 accumulation.
    y = jnp.dot(h, w2_ref[...], preferred_element_type=jnp.float32)
    y = y + b2_ref[...]
    o_ref[...] = jax.nn.sigmoid(y)                    # sigmoid via EUP exp


def decoder_forward(z, w1, b1, w2, b2, *, tb=512):
    """z: (B, latent_dims) f32 -> (B, 1, 28, 28) f32.

    w1: (latent_dims, 512), b1: (1, 512), w2: (512, 784), b2: (1, 784)  [pre-transposed]
    """
    B = z.shape[0]
    if tb >= B:
        tb = B                              # single full tile (block == full array dim is legal)
    else:
        tb = max(8, (tb // 8) * 8)          # partial tile: keep sublane dim a multiple of 8
    grid = (pl.cdiv(B, tb),)

    # Zero-pad layer-2 params to the lane-dense width once; padded columns produce
    # sigmoid(0)=0.5 which is sliced away below.
    w2p = jnp.pad(w2, ((0, 0), (0, OUT_PAD - OUT)))
    b2p = jnp.pad(b2, ((0, 0), (0, OUT_PAD - OUT)))

    flops = 2 * B * (LATENT_DIMS * HIDDEN + HIDDEN * OUT_PAD)
    bytes_accessed = 4 * (
        B * LATENT_DIMS                    # z
        + LATENT_DIMS * HIDDEN + HIDDEN    # w1, b1
        + HIDDEN * OUT_PAD + OUT_PAD       # w2, b2
        + B * OUT_PAD                      # out
    )

    out = pl.pallas_call(
        decoder_kernel,
        out_shape=jax.ShapeDtypeStruct((B, OUT_PAD), jnp.float32),
        grid=grid,
        in_specs=[
            pl.BlockSpec((tb, LATENT_DIMS), lambda i: (i, 0)),      # z: tiled over batch
            pl.BlockSpec((LATENT_DIMS, HIDDEN), lambda i: (0, 0)),  # w1: resident
            pl.BlockSpec((1, HIDDEN), lambda i: (0, 0)),            # b1: resident
            pl.BlockSpec((HIDDEN, OUT_PAD), lambda i: (0, 0)),      # w2: resident
            pl.BlockSpec((1, OUT_PAD), lambda i: (0, 0)),           # b2: resident
        ],
        out_specs=pl.BlockSpec((tb, OUT_PAD), lambda i: (i, 0)),
        compiler_params=pltpu.CompilerParams(
            dimension_semantics=("parallel",),
        ),
        cost_estimate=pl.CostEstimate(
            flops=flops,
            transcendentals=B * OUT_PAD,
            bytes_accessed=bytes_accessed,
        ),
    )(z, w1, b1, w2p, b2p)

    # Drop lane padding, then reshape to NCHW to match torch's z.reshape((-1, 1, 28, 28)).
    # TODO(synk): keep the (B, 784) layout downstream if the consumer allows it — the
    # NCHW re-tiling is an XLA relayout/copy outside the kernel.
    return out[:, :OUT].reshape(B, 1, 28, 28)


def init_params(key):
    """Deterministic init mirroring nn.Linear shapes (weights pre-transposed)."""
    k1, k2, k3, k4 = jax.random.split(key, 4)
    # PyTorch nn.Linear default init: U(-1/sqrt(fan_in), 1/sqrt(fan_in))
    lim1 = 1.0 / jnp.sqrt(LATENT_DIMS)
    lim2 = 1.0 / jnp.sqrt(HIDDEN)
    w1 = jax.random.uniform(k1, (LATENT_DIMS, HIDDEN), jnp.float32, -lim1, lim1)
    b1 = jax.random.uniform(k2, (1, HIDDEN), jnp.float32, -lim1, lim1)
    w2 = jax.random.uniform(k3, (HIDDEN, OUT), jnp.float32, -lim2, lim2)
    b2 = jax.random.uniform(k4, (1, OUT), jnp.float32, -lim2, lim2)
    return w1, b1, w2, b2


if __name__ == "__main__":
    key = jax.random.PRNGKey(0)
    kz, kp = jax.random.split(key)

    B = 8  # small batch for the sanity run
    z = jax.random.normal(kz, (B, LATENT_DIMS), dtype=jnp.float32)
    w1, b1, w2, b2 = init_params(kp)

    out = decoder_forward(z, w1, b1, w2, b2)
    out = jax.block_until_ready(out)

    # Sanity check against plain-JAX reference.
    ref = jax.nn.sigmoid(
        jnp.maximum(z @ w1 + b1, 0.0) @ w2 + b2
    ).reshape(B, 1, 28, 28)
    assert out.shape == (B, 1, 28, 28), out.shape
    assert jnp.allclose(out, ref, atol=1e-5, rtol=1e-5), "mismatch vs reference"

    print("KERNEL_OK")
</pallas_src>

<mosaic_0001>
module attributes {stable_mosaic.version = 11 : i64} {
  func.func @decoder_kernel(%arg0: i32, %arg1: memref<8x2xf32, #tpu.memory_space<vmem>>, %arg2: memref<2x512xf32, #tpu.memory_space<vmem>>, %arg3: memref<1x512xf32, #tpu.memory_space<vmem>>, %arg4: memref<512x896xf32, #tpu.memory_space<vmem>>, %arg5: memref<1x896xf32, #tpu.memory_space<vmem>>, %arg6: memref<8x896xf32, #tpu.memory_space<vmem>>) attributes {dimension_semantics = [#tpu.dimension_semantics<parallel>], iteration_bounds = array<i64: 1>, scalar_prefetch = 0 : i64, scratch_operands = 0 : i64, tpu.core_type = #tpu.core_type<tc>, window_params = [{transform_indices = @transform_0, window_bounds = array<i64: 8, 2>}, {pipeline_mode = #tpu.pipeline_mode<synchronous>, transform_indices = @transform_1, window_bounds = array<i64: 2, 512>}, {pipeline_mode = #tpu.pipeline_mode<synchronous>, transform_indices = @transform_2, window_bounds = array<i64: 1, 512>}, {pipeline_mode = #tpu.pipeline_mode<synchronous>, transform_indices = @transform_3, window_bounds = array<i64: 512, 896>}, {pipeline_mode = #tpu.pipeline_mode<synchronous>, transform_indices = @transform_4, window_bounds = array<i64: 1, 896>}, {transform_indices = @transform_5, window_bounds = array<i64: 8, 896>}]} {
    %c0 = arith.constant 0 : index
    %c0_0 = arith.constant 0 : index
    %0 = vector.load %arg1[%c0, %c0_0] : memref<8x2xf32, #tpu.memory_space<vmem>>, vector<8x2xf32>
    %c0_1 = arith.constant 0 : index
    %c0_2 = arith.constant 0 : index
    %1 = vector.load %arg3[%c0_1, %c0_2] : memref<1x512xf32, #tpu.memory_space<vmem>>, vector<1x512xf32>
    %2 = vector.extract_strided_slice %0 {offsets = [0, 0], sizes = [8, 1], strides = [1, 1]} : vector<8x2xf32> to vector<8x1xf32>
    %c0_3 = arith.constant 0 : index
    %c0_4 = arith.constant 0 : index
    %3 = vector.load %arg2[%c0_3, %c0_4] : memref<2x512xf32, #tpu.memory_space<vmem>>, vector<1x512xf32>
    %4 = vector.broadcast %2 : vector<8x1xf32> to vector<8x512xf32>
    %5 = vector.broadcast %3 : vector<1x512xf32> to vector<8x512xf32>
    %6 = arith.mulf %4, %5 : vector<8x512xf32>
    %7 = vector.broadcast %1 : vector<1x512xf32> to vector<8x512xf32>
    %8 = arith.addf %7, %6 : vector<8x512xf32>
    %9 = vector.extract_strided_slice %0 {offsets = [0, 1], sizes = [8, 1], strides = [1, 1]} : vector<8x2xf32> to vector<8x1xf32>
    %c1 = arith.constant 1 : index
    %c0_5 = arith.constant 0 : index
    %10 = vector.load %arg2[%c1, %c0_5] : memref<2x512xf32, #tpu.memory_space<vmem>>, vector<1x512xf32>
    %11 = vector.broadcast %9 : vector<8x1xf32> to vector<8x512xf32>
    %12 = vector.broadcast %10 : vector<1x512xf32> to vector<8x512xf32>
    %13 = arith.mulf %11, %12 : vector<8x512xf32>
    %14 = arith.addf %8, %13 : vector<8x512xf32>
    %cst = arith.constant 0.000000e+00 : f32
    %15 = vector.broadcast %cst : f32 to vector<8x512xf32>
    %16 = arith.maximumf %14, %15 : vector<8x512xf32>
    %c0_6 = arith.constant 0 : index
    %c0_7 = arith.constant 0 : index
    %17 = vector.load %arg4[%c0_6, %c0_7] : memref<512x896xf32, #tpu.memory_space<vmem>>, vector<512x896xf32>
    %cst_8 = arith.constant dense<0.000000e+00> : vector<8x896xf32>
    %18 = tpu.matmul %16, %17, %cst_8 {dimension_numbers = #tpu.dot_dimension_numbers<[1], [0], [0], [1], [0, 0, 1, 1], [], []>} : vector<8x512xf32>, vector<512x896xf32>, vector<8x896xf32> -> vector<8x896xf32>
    %c0_9 = arith.constant 0 : index
    %c0_10 = arith.constant 0 : index
    %19 = vector.load %arg5[%c0_9, %c0_10] : memref<1x896xf32, #tpu.memory_space<vmem>>, vector<1x896xf32>
    %20 = vector.broadcast %19 : vector<1x896xf32> to vector<8x896xf32>
    %21 = arith.addf %18, %20 : vector<8x896xf32>
    %22 = arith.negf %21 : vector<8x896xf32>
    %23 = math.exp %22 : vector<8x896xf32>
    %cst_11 = arith.constant 1.000000e+00 : f32
    %24 = vector.broadcast %cst_11 : f32 to vector<8x896xf32>
    %25 = arith.addf %24, %23 : vector<8x896xf32>
    %26 = arith.divf %24, %25 : vector<8x896xf32>
    %c0_12 = arith.constant 0 : index
    %c0_13 = arith.constant 0 : index
    %27 = vector.load %arg6[%c0_12, %c0_13] : memref<8x896xf32, #tpu.memory_space<vmem>>, vector<8x896xf32>
    tpu.vector_store %arg6[%c0_12, %c0_13], %26 {strides = array<i32>} : memref<8x896xf32, #tpu.memory_space<vmem>>, vector<8x896xf32>,
    return
  }
  func.func @transform_0(%arg0: i32) -> (i32, i32) {
    %c0_i32 = arith.constant 0 : i32
    %c0_i32_0 = arith.constant 0 : i32
    return %arg0, %c0_i32 : i32, i32
  }
  func.func @transform_1(%arg0: i32) -> (i32, i32) {
    %c0_i32 = arith.constant 0 : i32
    %c0_i32_0 = arith.constant 0 : i32
    %c0_i32_1 = arith.constant 0 : i32
    return %c0_i32, %c0_i32_0 : i32, i32
  }
  func.func @transform_2(%arg0: i32) -> (i32, i32) {
    %c0_i32 = arith.constant 0 : i32
    %c0_i32_0 = arith.constant 0 : i32
    %c0_i32_1 = arith.constant 0 : i32
    return %c0_i32, %c0_i32_0 : i32, i32
  }
  func.func @transform_3(%arg0: i32) -> (i32, i32) {
    %c0_i32 = arith.constant 0 : i32
    %c0_i32_0 = arith.constant 0 : i32
    %c0_i32_1 = arith.constant 0 : i32
    return %c0_i32, %c0_i32_0 : i32, i32
  }
  func.func @transform_4(%arg0: i32) -> (i32, i32) {
    %c0_i32 = arith.constant 0 : i32
    %c0_i32_0 = arith.constant 0 : i32
    %c0_i32_1 = arith.constant 0 : i32
    return %c0_i32, %c0_i32_0 : i32, i32
  }
  func.func @transform_5(%arg0: i32) -> (i32, i32) {
    %c0_i32 = arith.constant 0 : i32
    %c0_i32_0 = arith.constant 0 : i32
    return %arg0, %c0_i32 : i32, i32
  }
}

</mosaic_0001>

<llo_original>
// kernel: tpu_custom_call.1
$region0: #{tpu_custom_call.1}
  #allocation0 [shape = 'u32[]', space=smem, size = 0x4, offset = 0x4, fixed_abs, tag = 'smem constant byte address 0x4 - core index']
  #allocation1 [shape = 'u32[144,128]{1,0:T(1,128)}', space=vmem, size = 0x12000, scoped, tag = 'internal scratch']
  %s0 = inlined_call_operand.vmem [shape: f32[8,2], index: 0, kind: input, shape index: {}]
  %s1 = inlined_call_operand.hbm [shape: f32[2,512], index: 1, kind: input, shape index: {}]
  %s2 = inlined_call_operand.hbm [shape: f32[1,512], index: 2, kind: input, shape index: {}]
  %s3 = inlined_call_operand.hbm [shape: f32[512,896], index: 3, kind: input, shape index: {}]
  %s4 = inlined_call_operand.hbm [shape: f32[1,896], index: 4, kind: input, shape index: {}]
  %s5 = inlined_call_operand.hbm [shape: f32[8,896], index: 5, kind: output, shape index: {}]
  %s6 = sld [smem:[#allocation0]]
  $region46: #{tpu_custom_call.1} parent=0
    _
  %s8 = ssub.s32 1, %s6
  %s9 = scalar_select 0, %s8, %s6
  $region1: #{tpu_custom_call.1} parent=0
    #allocation2 [shape = 'u8[4096]{0}', space=vmem, size = 0x1000, scoped, tag = 'input window, operand 1, single buffered']
    #allocation3 [shape = 's32[1]{0}', space=sflag, size = 0x4, scoped, tag = 'scoped memory for tpu_custom_call.1']
    #allocation4 [shape = 's32[1]{0}', space=sflag, size = 0x4, scoped, tag = 'scoped memory for tpu_custom_call.1']
    #allocation5 [shape = 'u8[2048]{0}', space=vmem, size = 0x800, scoped, tag = 'input window, operand 2, single buffered']
    #allocation6 [shape = 's32[1]{0}', space=sflag, size = 0x4, scoped, tag = 'scoped memory for tpu_custom_call.1']
    #allocation7 [shape = 'u8[1835008]{0}', space=vmem, size = 0x1c0000, scoped, tag = 'input window, operand 3, single buffered']
    #allocation8 [shape = 'u8[3584]{0}', space=vmem, size = 0x1000, scoped, tag = 'input window, operand 4, single buffered']
    #allocation9 [shape = 's32[1]{0}', space=sflag, size = 0x4, scoped, tag = 'scoped memory for tpu_custom_call.1']
    #allocation10 [shape = 'u8[28672]{0}', space=vmem, size = 0x7000, scoped, tag = 'output window, operand 0, single buffered']
    %10 = vsyncpa [#allocation3], 0
    %11 = vsyncpa [#allocation6], 0
    %12 = vsyncpa [#allocation9], 0
    %13 = vsyncpa [#allocation4], 0
    // Predicated region
    $region2: #{tpu_custom_call.1} parent=1 // pred_check
      _
    $region3: #{tpu_custom_call.1} parent=1 // pred_check_branch
      %15 = sbr.rel (0) target = $region5
    $region4: #{tpu_custom_call.1} parent=1 // pred_region
      _
    $region5: #{tpu_custom_call.1} parent=1 // pred_fallthru
      _
    // Predicated region
    $region6: #{tpu_custom_call.1} parent=1 // pred_check
      _
    $region7: #{tpu_custom_call.1} parent=1 // pred_check_branch
      %17 = sbr.rel (0) target = $region9
    $region8: #{tpu_custom_call.1} parent=1 // pred_region
      %s19 = ssub.s32 128, 128
      %20 = vsyncadd [#allocation3], %s19
      %s22 = sshll.u32 [#allocation2], 4
      %s23 = int_to_ptr.vmem [resolvable:$true] %s22
      %25 = dma.hbm_to_vmem [thread:$0]  %s1, 128, %s23, [#allocation3]
    $region9: #{tpu_custom_call.1} parent=1 // pred_fallthru
      _
    // Predicated region
    $region10: #{tpu_custom_call.1} parent=1 // pred_check
      _
    $region11: #{tpu_custom_call.1} parent=1 // pred_check_branch
      %27 = sbr.rel (0) target = $region13
    $region12: #{tpu_custom_call.1} parent=1 // pred_region
      %s29 = ssub.s32 64, 64
      %30 = vsyncadd [#allocation6], %s29
      %s32 = sshll.u32 [#allocation5], 4
      %s33 = int_to_ptr.vmem [resolvable:$true] %s32
      %35 = dma.hbm_to_vmem [thread:$0]  %s2, 64, %s33, [#allocation6]
    $region13: #{tpu_custom_call.1} parent=1 // pred_fallthru
      _
    // Predicated region
    $region14: #{tpu_custom_call.1} parent=1 // pred_check
      _
    $region15: #{tpu_custom_call.1} parent=1 // pred_check_branch
      %37 = sbr.rel (0) target = $region17
    $region16: #{tpu_custom_call.1} parent=1 // pred_region
      %s39 = ssub.s32 57344, 57344
      %40 = vsyncadd [#allocation6], %s39
      %s41 = sshll.u32 [#allocation7], 4
      %s42 = int_to_ptr.vmem [resolvable:$true] %s41
      %47 = dma.hbm_to_vmem [thread:$0]  %s3, 57344, %s42, [#allocation6], 896, 896, 56
    $region17: #{tpu_custom_call.1} parent=1 // pred_fallthru
      _
    // Predicated region
    $region18: #{tpu_custom_call.1} parent=1 // pred_check
      _
    $region19: #{tpu_custom_call.1} parent=1 // pred_check_branch
      %49 = sbr.rel (0) target = $region21
    $region20: #{tpu_custom_call.1} parent=1 // pred_region
      %s51 = ssub.s32 112, 112
      %52 = vsyncadd [#allocation9], %s51
      %s54 = sshll.u32 [#allocation8], 4
      %s55 = int_to_ptr.vmem [resolvable:$true] %s54
      %57 = dma.hbm_to_vmem [thread:$0]  %s4, 112, %s55, [#allocation9]
    $region21: #{tpu_custom_call.1} parent=1 // pred_fallthru
      _
    // Predicated region
    $region22: #{tpu_custom_call.1} parent=1 // pred_check
      _
    $region23: #{tpu_custom_call.1} parent=1 // pred_check_branch
      %59 = sbr.rel (0) target = $region25
    $region24: #{tpu_custom_call.1} parent=1 // pred_region
      %60 = dma.done [#allocation3], 128
    $region25: #{tpu_custom_call.1} parent=1 // pred_fallthru
      _
    // Predicated region
    $region26: #{tpu_custom_call.1} parent=1 // pred_check
      _
    $region27: #{tpu_custom_call.1} parent=1 // pred_check_branch
      %62 = sbr.rel (0) target = $region29
    $region28: #{tpu_custom_call.1} parent=1 // pred_region
      %63 = dma.done [#allocation6], 64
    $region29: #{tpu_custom_call.1} parent=1 // pred_fallthru
      _
    // Predicated region
    $region30: #{tpu_custom_call.1} parent=1 // pred_check
      _
    $region31: #{tpu_custom_call.1} parent=1 // pred_check_branch
      %65 = sbr.rel (0) target = $region33
    $region32: #{tpu_custom_call.1} parent=1 // pred_region
      %66 = dma.done [#allocation6], 57344
    $region33: #{tpu_custom_call.1} parent=1 // pred_fallthru
      _
    // Predicated region
    $region34: #{tpu_custom_call.1} parent=1 // pred_check
      _
    $region35: #{tpu_custom_call.1} parent=1 // pred_check_branch
      %68 = sbr.rel (0) target = $region37
    $region36: #{tpu_custom_call.1} parent=1 // pred_region
      %69 = dma.done [#allocation9], 112
    $region37: #{tpu_custom_call.1} parent=1 // pred_fallthru
      _
    %v70 = vld [vmem:[%s0] sm:$0xff]
    %v71 = vld [vmem:[#allocation5] sm:$0xf]
    %v72 = vld [vmem:[#allocation2] ss:$2 sm:$0xf]
    %74 = vset.pattern.permute.xlu0 0
    %75 = vperm.xlu0 %74, %v70
    %v76 = vpop.permute.xlu0 %75
    %v79 = vlaneseq
    %v80 = vshrl.u32 %v79, 7
    %v81 = vsub.s32 0, %v80
    %v82 = vrot.slane %v72, %v81
    %v83 = vlaneseq
    %v84 = vshrl.u32 %v83, 7
    %v85 = vsub.s32 1, %v84
    %v86 = vrot.slane %v72, %v85
    %v87 = vlaneseq
    %v88 = vshrl.u32 %v87, 7
    %v89 = vsub.s32 2, %v88
    %v90 = vrot.slane %v72, %v89
    %v91 = vlaneseq
    %v92 = vshrl.u32 %v91, 7
    %v93 = vsub.s32 3, %v92
    %v94 = vrot.slane %v72, %v93
    %v99 = vmul.f32 %v76, %v82
    %v100 = vmul.f32 %v76, %v86
    %v101 = vmul.f32 %v76, %v90
    %v102 = vmul.f32 %v76, %v94
    %v104 = vlaneseq
    %v105 = vshrl.u32 %v104, 7
    %v106 = vsub.s32 0, %v105
    %v107 = vrot.slane %v71, %v106
    %v108 = vlaneseq
    %v109 = vshrl.u32 %v108, 7
    %v110 = vsub.s32 1, %v109
    %v111 = vrot.slane %v71, %v110
    %v112 = vlaneseq
    %v113 = vshrl.u32 %v112, 7
    %v114 = vsub.s32 2, %v113
    %v115 = vrot.slane %v71, %v114
    %v116 = vlaneseq
    %v117 = vshrl.u32 %v116, 7
    %v118 = vsub.s32 3, %v117
    %v119 = vrot.slane %v71, %v118
    %v124 = vadd.f32 %v107, %v99
    %v125 = vadd.f32 %v111, %v100
    %v126 = vadd.f32 %v115, %v101
    %v127 = vadd.f32 %v119, %v102
    %s128 = scalar_lea.vmem [#allocation2], 1
    %v129 = vld [vmem:[%s128] ss:$2 sm:$0xf]
    %130 = vset.pattern.permute.xlu0 1
    %131 = vperm.xlu0 %130, %v70
    %v132 = vpop.permute.xlu0 %131
    %v135 = vlaneseq
    %v136 = vshrl.u32 %v135, 7
    %v137 = vsub.s32 0, %v136
    %v138 = vrot.slane %v129, %v137
    %v139 = vlaneseq
    %v140 = vshrl.u32 %v139, 7
    %v141 = vsub.s32 1, %v140
    %v142 = vrot.slane %v129, %v141
    %v143 = vlaneseq
    %v144 = vshrl.u32 %v143, 7
    %v145 = vsub.s32 2, %v144
    %v146 = vrot.slane %v129, %v145
    %v147 = vlaneseq
    %v148 = vshrl.u32 %v147, 7
    %v149 = vsub.s32 3, %v148
    %v150 = vrot.slane %v129, %v149
    %v155 = vmul.f32 %v132, %v138
    %v156 = vmul.f32 %v132, %v142
    %v157 = vmul.f32 %v132, %v146
    %v158 = vmul.f32 %v132, %v150
    %v159 = vadd.f32 %v124, %v155
    %v160 = vadd.f32 %v125, %v156
    %v161 = vadd.f32 %v126, %v157
    %v162 = vadd.f32 %v127, %v158
    %v163 = vmax.f32 %v159, 0.0
    %v164 = vmax.f32 %v160, 0.0
    %v165 = vmax.f32 %v161, 0.0
    %v166 = vmax.f32 %v162, 0.0
    %v167 = vld [vmem:[#allocation7] sm:$0xff]
    %v168 = vld [vmem:[#allocation7 + $0x8] sm:$0xff]
    %v169 = vld [vmem:[#allocation7 + $0x10] sm:$0xff]
    %v170 = vld [vmem:[#allocation7 + $0x18] sm:$0xff]
    %v171 = vld [vmem:[#allocation7 + $0x20] sm:$0xff]
    %v172 = vld [vmem:[#allocation7 + $0x28] sm:$0xff]
    %v173 = vld [vmem:[#allocation7 + $0x30] sm:$0xff]
    %v174 = vld [vmem:[#allocation7 + $0x38] sm:$0xff]
    %v175 = vld [vmem:[#allocation7 + $0x40] sm:$0xff]
    %v176 = vld [vmem:[#allocation7 + $0x48] sm:$0xff]
    %v177 = vld [vmem:[#allocation7 + $0x50] sm:$0xff]
    %v178 = vld [vmem:[#allocation7 + $0x58] sm:$0xff]
    %v179 = vld [vmem:[#allocation7 + $0x60] sm:$0xff]
    %v180 = vld [vmem:[#allocation7 + $0x68] sm:$0xff]
    %v181 = vld [vmem:[#allocation7 + $0x70] sm:$0xff]
    %v182 = vld [vmem:[#allocation7 + $0x78] sm:$0xff]
    %v183 = vld [vmem:[#allocation7 + $0x80] sm:$0xff]
    %v184 = vld [vmem:[#allocation7 + $0x88] sm:$0xff]
    %v185 = vld [vmem:[#allocation7 + $0x90] sm:$0xff]
    %v186 = vld [vmem:[#allocation7 + $0x98] sm:$0xff]
    %v187 = vld [vmem:[#allocation7 + $0xa0] sm:$0xff]
    %v188 = vld [vmem:[#allocation7 + $0xa8] sm:$0xff]
    %v189 = vld [vmem:[#allocation7 + $0xb0] sm:$0xff]
    %v190 = vld [vmem:[#allocation7 + $0xb8] sm:$0xff]
    %v191 = vld [vmem:[#allocation7 + $0xc0] sm:$0xff]
    %v192 = vld [vmem:[#allocation7 + $0xc8] sm:$0xff]
    %v193 = vld [vmem:[#allocation7 + $0xd0] sm:$0xff]
    %v194 = vld [vmem:[#allocation7 + $0xd8] sm:$0xff]
    %v195 = vld [vmem:[#allocation7 + $0xe0] sm:$0xff]
    %v196 = vld [vmem:[#allocation7 + $0xe8] sm:$0xff]
    %v197 = vld [vmem:[#allocation7 + $0xf0] sm:$0xff]
    %v198 = vld [vmem:[#allocation7 + $0xf8] sm:$0xff]
    %v199 = vld [vmem:[#allocation7 + $0x100] sm:$0xff]
    %v200 = vld [vmem:[#allocation7 + $0x108] sm:$0xff]
    %v201 = vld [vmem:[#allocation7 + $0x110] sm:$0xff]
    %v202 = vld [vmem:[#allocation7 + $0x118] sm:$0xff]
    %v203 = vld [vmem:[#allocation7 + $0x120] sm:$0xff]
    %v204 = vld [vmem:[#allocation7 + $0x128] sm:$0xff]
    %v205 = vld [vmem:[#allocation7 + $0x130] sm:$0xff]
    %v206 = vld [vmem:[#allocation7 + $0x138] sm:$0xff]
    %v207 = vld [vmem:[#allocation7 + $0x140] sm:$0xff]
    %v208 = vld [vmem:[#allocation7 + $0x148] sm:$0xff]
    %v209 = vld [vmem:[#allocation7 + $0x150] sm:$0xff]
    %v210 = vld [vmem:[#allocation7 + $0x158] sm:$0xff]
    %v211 = vld [vmem:[#allocation7 + $0x160] sm:$0xff]
    %v212 = vld [vmem:[#allocation7 + $0x168] sm:$0xff]
    %v213 = vld [vmem:[#allocation7 + $0x170] sm:$0xff]
    %v214 = vld [vmem:[#allocation7 + $0x178] sm:$0xff]
    %v215 = vld [vmem:[#allocation7 + $0x180] sm:$0xff]
    %v216 = vld [vmem:[#allocation7 + $0x188] sm:$0xff]
    %v217 = vld [vmem:[#allocation7 + $0x190] sm:$0xff]
    %v218 = vld [vmem:[#allocation7 + $0x198] sm:$0xff]
    %v219 = vld [vmem:[#allocation7 + $0x1a0] sm:$0xff]
    %v220 = vld [vmem:[#allocation7 + $0x1a8] sm:$0xff]
    %v221 = vld [vmem:[#allocation7 + $0x1b0] sm:$0xff]
    %v222 = vld [vmem:[#allocation7 + $0x1b8] sm:$0xff]
    %v223 = vld [vmem:[#allocation7 + $0x1c0] sm:$0xff]
    %v224 = vld [vmem:[#allocation7 + $0x1c8] sm:$0xff]
    %v225 = vld [vmem:[#allocation7 + $0x1d0] sm:$0xff]
    %v226 = vld [vmem:[#allocation7 + $0x1d8] sm:$0xff]
    %v227 = vld [vmem:[#allocation7 + $0x1e0] sm:$0xff]
    %v228 = vld [vmem:[#allocation7 + $0x1e8] sm:$0xff]
    %v229 = vld [vmem:[#allocation7 + $0x1f0] sm:$0xff]
    %v230 = vld [vmem:[#allocation7 + $0x1f8] sm:$0xff]
    %v231 = vld [vmem:[#allocation7 + $0x200] sm:$0xff]
    %v232 = vld [vmem:[#allocation7 + $0x208] sm:$0xff]
    %v233 = vld [vmem:[#allocation7 + $0x210] sm:$0xff]
    %v234 = vld [vmem:[#allocation7 + $0x218] sm:$0xff]
    %v235 = vld [vmem:[#allocation7 + $0x220] sm:$0xff]
    %v236 = vld [vmem:[#allocation7 + $0x228] sm:$0xff]
    %v237 = vld [vmem:[#allocation7 + $0x230] sm:$0xff]
    %v238 = vld [vmem:[#allocation7 + $0x238] sm:$0xff]
    %v239 = vld [vmem:[#allocation7 + $0x240] sm:$0xff]
    %v240 = vld [vmem:[#allocation7 + $0x248] sm:$0xff]
    %v241 = vld [vmem:[#allocation7 + $0x250] sm:$0xff]
    %v242 = vld [vmem:[#allocation7 + $0x258] sm:$0xff]
    %v243 = vld [vmem:[#allocation7 + $0x260] sm:$0xff]
    %v244 = vld [vmem:[#allocation7 + $0x268] sm:$0xff]
    %v245 = vld [vmem:[#allocation7 + $0x270] sm:$0xff]
    %v246 = vld [vmem:[#allocation7 + $0x278] sm:$0xff]
    %v247 = vld [vmem:[#allocation7 + $0x280] sm:$0xff]
    %v248 = vld [vmem:[#allocation7 + $0x288] sm:$0xff]
    %v249 = vld [vmem:[#allocation7 + $0x290] sm:$0xff]
    %v250 = vld [vmem:[#allocation7 + $0x298] sm:$0xff]
    %v251 = vld [vmem:[#allocation7 + $0x2a0] sm:$0xff]
    %v252 = vld [vmem:[#allocation7 + $0x2a8] sm:$0xff]
    %v253 = vld [vmem:[#allocation7 + $0x2b0] sm:$0xff]
    %v254 = vld [vmem:[#allocation7 + $0x2b8] sm:$0xff]
    %v255 = vld [vmem:[#allocation7 + $0x2c0] sm:$0xff]
    %v256 = vld [vmem:[#allocation7 + $0x2c8] sm:$0xff]
    %v257 = vld [vmem:[#allocation7 + $0x2d0] sm:$0xff]
    %v258 = vld [vmem:[#allocation7 + $0x2d8] sm:$0xff]
    %v259 = vld [vmem:[#allocation7 + $0x2e0] sm:$0xff]
    %v260 = vld [vmem:[#allocation7 + $0x2e8] sm:$0xff]
    %v261 = vld [vmem:[#allocation7 + $0x2f0] sm:$0xff]
    %v262 = vld [vmem:[#allocation7 + $0x2f8] sm:$0xff]
    %v263 = vld [vmem:[#allocation7 + $0x300] sm:$0xff]
    %v264 = vld [vmem:[#allocation7 + $0x308] sm:$0xff]
    %v265 = vld [vmem:[#allocation7 + $0x310] sm:$0xff]
    %v266 = vld [vmem:[#allocation7 + $0x318] sm:$0xff]
    %v267 = vld [vmem:[#allocation7 + $0x320] sm:$0xff]
    %v268 = vld [vmem:[#allocation7 + $0x328] sm:$0xff]
    %v269 = vld [vmem:[#allocation7 + $0x330] sm:$0xff]
    %v270 = vld [vmem:[#allocation7 + $0x338] sm:$0xff]
    %v271 = vld [vmem:[#allocation7 + $0x340] sm:$0xff]
    %v272 = vld [vmem:[#allocation7 + $0x348] sm:$0xff]
    %v273 = vld [vmem:[#allocation7 + $0x350] sm:$0xff]
    %v274 = vld [vmem:[#allocation7 + $0x358] sm:$0xff]
    %v275 = vld [vmem:[#allocation7 + $0x360] sm:$0xff]
    %v276 = vld [vmem:[#allocation7 + $0x368] sm:$0xff]
    %v277 = vld [vmem:[#allocation7 + $0x370] sm:$0xff]
    %v278 = vld [vmem:[#allocation7 + $0x378] sm:$0xff]
    %v279 = vld [vmem:[#allocation7 + $0x380] sm:$0xff]
    %v280 = vld [vmem:[#allocation7 + $0x388] sm:$0xff]
    %v281 = vld [vmem:[#allocation7 + $0x390] sm:$0xff]
    %v282 = vld [vmem:[#allocation7 + $0x398] sm:$0xff]
    %v283 = vld [vmem:[#allocation7 + $0x3a0] sm:$0xff]
    %v284 = vld [vmem:[#allocation7 + $0x3a8] sm:$0xff]
    %v285 = vld [vmem:[#allocation7 + $0x3b0] sm:$0xff]
    %v286 = vld [vmem:[#allocation7 + $0x3b8] sm:$0xff]
    %v287 = vld [vmem:[#allocation7 + $0x3c0] sm:$0xff]
    %v288 = vld [vmem:[#allocation7 + $0x3c8] sm:$0xff]
    %v289 = vld [vmem:[#allocation7 + $0x3d0] sm:$0xff]
    %v290 = vld [vmem:[#allocation7 + $0x3d8] sm:$0xff]
    %v291 = vld [vmem:[#allocation7 + $0x3e0] sm:$0xff]
    %v292 = vld [vmem:[#allocation7 + $0x3e8] sm:$0xff]
    %v293 = vld [vmem:[#allocation7 + $0x3f0] sm:$0xff]
    %v294 = vld [vmem:[#allocation7 + $0x3f8] sm:$0xff]
    %v295 = vld [vmem:[#allocation7 + $0x400] sm:$0xff]
    %v296 = vld [vmem:[#allocation7 + $0x408] sm:$0xff]
    %v297 = vld [vmem:[#allocation7 + $0x410] sm:$0xff]
    %v298 = vld [vmem:[#allocation7 + $0x418] sm:$0xff]
    %v299 = vld [vmem:[#allocation7 + $0x420] sm:$0xff]
    %v300 = vld [vmem:[#allocation7 + $0x428] sm:$0xff]
    %v301 = vld [vmem:[#allocation7 + $0x430] sm:$0xff]
    %v302 = vld [vmem:[#allocation7 + $0x438] sm:$0xff]
    %v303 = vld [vmem:[#allocation7 + $0x440] sm:$0xff]
    %v304 = vld [vmem:[#allocation7 + $0x448] sm:$0xff]
    %v305 = vld [vmem:[#allocation7 + $0x450] sm:$0xff]
    %v306 = vld [vmem:[#allocation7 + $0x458] sm:$0xff]
    %v307 = vld [vmem:[#allocation7 + $0x460] sm:$0xff]
    %v308 = vld [vmem:[#allocation7 + $0x468] sm:$0xff]
    %v309 = vld [vmem:[#allocation7 + $0x470] sm:$0xff]
    %v310 = vld [vmem:[#allocation7 + $0x478] sm:$0xff]
    %v311 = vld [vmem:[#allocation7 + $0x480] sm:$0xff]
    %v312 = vld [vmem:[#allocation7 + $0x488] sm:$0xff]
    %v313 = vld [vmem:[#allocation7 + $0x490] sm:$0xff]
    %v314 = vld [vmem:[#allocation7 + $0x498] sm:$0xff]
    %v315 = vld [vmem:[#allocation7 + $0x4a0] sm:$0xff]
    %v316 = vld [vmem:[#allocation7 + $0x4a8] sm:$0xff]
    %v317 = vld [vmem:[#allocation7 + $0x4b0] sm:$0xff]
    %v318 = vld [vmem:[#allocation7 + $0x4b8] sm:$0xff]
    %v319 = vld [vmem:[#allocation7 + $0x4c0] sm:$0xff]
    %v320 = vld [vmem:[#allocation7 + $0x4c8] sm:$0xff]
    %v321 = vld [vmem:[#allocation7 + $0x4d0] sm:$0xff]
    %v322 = vld [vmem:[#allocation7 + $0x4d8] sm:$0xff]
    %v323 = vld [vmem:[#allocation7 + $0x4e0] sm:$0xff]
    %v324 = vld [vmem:[#allocation7 + $0x4e8] sm:$0xff]
    %v325 = vld [vmem:[#allocation7 + $0x4f0] sm:$0xff]
    %v326 = vld [vmem:[#allocation7 + $0x4f8] sm:$0xff]
    %v327 = vld [vmem:[#allocation7 + $0x500] sm:$0xff]
    %v328 = vld [vmem:[#allocation7 + $0x508] sm:$0xff]
    %v329 = vld [vmem:[#allocation7 + $0x510] sm:$0xff]
    %v330 = vld [vmem:[#allocation7 + $0x518] sm:$0xff]
    %v331 = vld [vmem:[#allocation7 + $0x520] sm:$0xff]
    %v332 = vld [vmem:[#allocation7 + $0x528] sm:$0xff]
    %v333 = vld [vmem:[#allocation7 + $0x530] sm:$0xff]
    %v334 = vld [vmem:[#allocation7 + $0x538] sm:$0xff]
    %v335 = vld [vmem:[#allocation7 + $0x540] sm:$0xff]
    %v336 = vld [vmem:[#allocation7 + $0x548] sm:$0xff]
    %v337 = vld [vmem:[#allocation7 + $0x550] sm:$0xff]
    %v338 = vld [vmem:[#allocation7 + $0x558] sm:$0xff]
    %v339 = vld [vmem:[#allocation7 + $0x560] sm:$0xff]
    %v340 = vld [vmem:[#allocation7 + $0x568] sm:$0xff]
    %v341 = vld [vmem:[#allocation7 + $0x570] sm:$0xff]
    %v342 = vld [vmem:[#allocation7 + $0x578] sm:$0xff]
    %v343 = vld [vmem:[#allocation7 + $0x580] sm:$0xff]
    %v344 = vld [vmem:[#allocation7 + $0x588] sm:$0xff]
    %v345 = vld [vmem:[#allocation7 + $0x590] sm:$0xff]
    %v346 = vld [vmem:[#allocation7 + $0x598] sm:$0xff]
    %v347 = vld [vmem:[#allocation7 + $0x5a0] sm:$0xff]
    %v348 = vld [vmem:[#allocation7 + $0x5a8] sm:$0xff]
    %v349 = vld [vmem:[#allocation7 + $0x5b0] sm:$0xff]
    %v350 = vld [vmem:[#allocation7 + $0x5b8] sm:$0xff]
    %v351 = vld [vmem:[#allocation7 + $0x5c0] sm:$0xff]
    %v352 = vld [vmem:[#allocation7 + $0x5c8] sm:$0xff]
    %v353 = vld [vmem:[#allocation7 + $0x5d0] sm:$0xff]
    %v354 = vld [vmem:[#allocation7 + $0x5d8] sm:$0xff]
    %v355 = vld [vmem:[#allocation7 + $0x5e0] sm:$0xff]
    %v356 = vld [vmem:[#allocation7 + $0x5e8] sm:$0xff]
    %v357 = vld [vmem:[#allocation7 + $0x5f0] sm:$0xff]
    %v358 = vld [vmem:[#allocation7 + $0x5f8] sm:$0xff]
    %v359 = vld [vmem:[#allocation7 + $0x600] sm:$0xff]
    %v360 = vld [vmem:[#allocation7 + $0x608] sm:$0xff]
    %v361 = vld [vmem:[#allocation7 + $0x610] sm:$0xff]
    %v362 = vld [vmem:[#allocation7 + $0x618] sm:$0xff]
    %v363 = vld [vmem:[#allocation7 + $0x620] sm:$0xff]
    %v364 = vld [vmem:[#allocation7 + $0x628] sm:$0xff]
    %v365 = vld [vmem:[#allocation7 + $0x630] sm:$0xff]
    %v366 = vld [vmem:[#allocation7 + $0x638] sm:$0xff]
    %v367 = vld [vmem:[#allocation7 + $0x640] sm:$0xff]
    %v368 = vld [vmem:[#allocation7 + $0x648] sm:$0xff]
    %v369 = vld [vmem:[#allocation7 + $0x650] sm:$0xff]
    %v370 = vld [vmem:[#allocation7 + $0x658] sm:$0xff]
    %v371 = vld [vmem:[#allocation7 + $0x660] sm:$0xff]
    %v372 = vld [vmem:[#allocation7 + $0x668] sm:$0xff]
    %v373 = vld [vmem:[#allocation7 + $0x670] sm:$0xff]
    %v374 = vld [vmem:[#allocation7 + $0x678] sm:$0xff]
    %v375 = vld [vmem:[#allocation7 + $0x680] sm:$0xff]
    %v376 = vld [vmem:[#allocation7 + $0x688] sm:$0xff]
    %v377 = vld [vmem:[#allocation7 + $0x690] sm:$0xff]
    %v378 = vld [vmem:[#allocation7 + $0x698] sm:$0xff]
    %v379 = vld [vmem:[#allocation7 + $0x6a0] sm:$0xff]
    %v380 = vld [vmem:[#allocation7 + $0x6a8] sm:$0xff]
    %v381 = vld [vmem:[#allocation7 + $0x6b0] sm:$0xff]
    %v382 = vld [vmem:[#allocation7 + $0x6b8] sm:$0xff]
    %v383 = vld [vmem:[#allocation7 + $0x6c0] sm:$0xff]
    %v384 = vld [vmem:[#allocation7 + $0x6c8] sm:$0xff]
    %v385 = vld [vmem:[#allocation7 + $0x6d0] sm:$0xff]
    %v386 = vld [vmem:[#allocation7 + $0x6d8] sm:$0xff]
    %v387 = vld [vmem:[#allocation7 + $0x6e0] sm:$0xff]
    %v388 = vld [vmem:[#allocation7 + $0x6e8] sm:$0xff]
    %v389 = vld [vmem:[#allocation7 + $0x6f0] sm:$0xff]
    %v390 = vld [vmem:[#allocation7 + $0x6f8] sm:$0xff]
    %v391 = vld [vmem:[#allocation7 + $0x700] sm:$0xff]
    %v392 = vld [vmem:[#allocation7 + $0x708] sm:$0xff]
    %v393 = vld [vmem:[#allocation7 + $0x710] sm:$0xff]
    %v394 = vld [vmem:[#allocation7 + $0x718] sm:$0xff]
    %v395 = vld [vmem:[#allocation7 + $0x720] sm:$0xff]
    %v396 = vld [vmem:[#allocation7 + $0x728] sm:$0xff]
    %v397 = vld [vmem:[#allocation7 + $0x730] sm:$0xff]
    %v398 = vld [vmem:[#allocation7 + $0x738] sm:$0xff]
    %v399 = vld [vmem:[#allocation7 + $0x740] sm:$0xff]
    %v400 = vld [vmem:[#allocation7 + $0x748] sm:$0xff]
    %v401 = vld [vmem:[#allocation7 + $0x750] sm:$0xff]
    %v402 = vld [vmem:[#allocation7 + $0x758] sm:$0xff]
    %v403 = vld [vmem:[#allocation7 + $0x760] sm:$0xff]
    %v404 = vld [vmem:[#allocation7 + $0x768] sm:$0xff]
    %v405 = vld [vmem:[#allocation7 + $0x770] sm:$0xff]
    %v406 = vld [vmem:[#allocation7 + $0x778] sm:$0xff]
    %v407 = vld [vmem:[#allocation7 + $0x780] sm:$0xff]
    %v408 = vld [vmem:[#allocation7 + $0x788] sm:$0xff]
    %v409 = vld [vmem:[#allocation7 + $0x790] sm:$0xff]
    %v410 = vld [vmem:[#allocation7 + $0x798] sm:$0xff]
    %v411 = vld [vmem:[#allocation7 + $0x7a0] sm:$0xff]
    %v412 = vld [vmem:[#allocation7 + $0x7a8] sm:$0xff]
    %v413 = vld [vmem:[#allocation7 + $0x7b0] sm:$0xff]
    %v414 = vld [vmem:[#allocation7 + $0x7b8] sm:$0xff]
    %v415 = vld [vmem:[#allocation7 + $0x7c0] sm:$0xff]
    %v416 = vld [vmem:[#allocation7 + $0x7c8] sm:$0xff]
    %v417 = vld [vmem:[#allocation7 + $0x7d0] sm:$0xff]
    %v418 = vld [vmem:[#allocation7 + $0x7d8] sm:$0xff]
    %v419 = vld [vmem:[#allocation7 + $0x7e0] sm:$0xff]
    %v420 = vld [vmem:[#allocation7 + $0x7e8] sm:$0xff]
    %v421 = vld [vmem:[#allocation7 + $0x7f0] sm:$0xff]
    %v422 = vld [vmem:[#allocation7 + $0x7f8] sm:$0xff]
    %v423 = vld [vmem:[#allocation7 + $0x800] sm:$0xff]
    %v424 = vld [vmem:[#allocation7 + $0x808] sm:$0xff]
    %v425 = vld [vmem:[#allocation7 + $0x810] sm:$0xff]
    %v426 = vld [vmem:[#allocation7 + $0x818] sm:$0xff]
    %v427 = vld [vmem:[#allocation7 + $0x820] sm:$0xff]
    %v428 = vld [vmem:[#allocation7 + $0x828] sm:$0xff]
    %v429 = vld [vmem:[#allocation7 + $0x830] sm:$0xff]
    %v430 = vld [vmem:[#allocation7 + $0x838] sm:$0xff]
    %v431 = vld [vmem:[#allocation7 + $0x840] sm:$0xff]
    %v432 = vld [vmem:[#allocation7 + $0x848] sm:$0xff]
    %v433 = vld [vmem:[#allocation7 + $0x850] sm:$0xff]
    %v434 = vld [vmem:[#allocation7 + $0x858] sm:$0xff]
    %v435 = vld [vmem:[#allocation7 + $0x860] sm:$0xff]
    %v436 = vld [vmem:[#allocation7 + $0x868] sm:$0xff]
    %v437 = vld [vmem:[#allocation7 + $0x870] sm:$0xff]
    %v438 = vld [vmem:[#allocation7 + $0x878] sm:$0xff]
    %v439 = vld [vmem:[#allocation7 + $0x880] sm:$0xff]
    %v440 = vld [vmem:[#allocation7 + $0x888] sm:$0xff]
    %v441 = vld [vmem:[#allocation7 + $0x890] sm:$0xff]
    %v442 = vld [vmem:[#allocation7 + $0x898] sm:$0xff]
    %v443 = vld [vmem:[#allocation7 + $0x8a0] sm:$0xff]
    %v444 = vld [vmem:[#allocation7 + $0x8a8] sm:$0xff]
    %v445 = vld [vmem:[#allocation7 + $0x8b0] sm:$0xff]
    %v446 = vld [vmem:[#allocation7 + $0x8b8] sm:$0xff]
    %v447 = vld [vmem:[#allocation7 + $0x8c0] sm:$0xff]
    %v448 = vld [vmem:[#allocation7 + $0x8c8] sm:$0xff]
    %v449 = vld [vmem:[#allocation7 + $0x8d0] sm:$0xff]
    %v450 = vld [vmem:[#allocation7 + $0x8d8] sm:$0xff]
    %v451 = vld [vmem:[#allocation7 + $0x8e0] sm:$0xff]
    %v452 = vld [vmem:[#allocation7 + $0x8e8] sm:$0xff]
    %v453 = vld [vmem:[#allocation7 + $0x8f0] sm:$0xff]
    %v454 = vld [vmem:[#allocation7 + $0x8f8] sm:$0xff]
    %v455 = vld [vmem:[#allocation7 + $0x900] sm:$0xff]
    %v456 = vld [vmem:[#allocation7 + $0x908] sm:$0xff]
    %v457 = vld [vmem:[#allocation7 + $0x910] sm:$0xff]
    %v458 = vld [vmem:[#allocation7 + $0x918] sm:$0xff]
    %v459 = vld [vmem:[#allocation7 + $0x920] sm:$0xff]
    %v460 = vld [vmem:[#allocation7 + $0x928] sm:$0xff]
    %v461 = vld [vmem:[#allocation7 + $0x930] sm:$0xff]
    %v462 = vld [vmem:[#allocation7 + $0x938] sm:$0xff]
    %v463 = vld [vmem:[#allocation7 + $0x940] sm:$0xff]
    %v464 = vld [vmem:[#allocation7 + $0x948] sm:$0xff]
    %v465 = vld [vmem:[#allocation7 + $0x950] sm:$0xff]
    %v466 = vld [vmem:[#allocation7 + $0x958] sm:$0xff]
    %v467 = vld [vmem:[#allocation7 + $0x960] sm:$0xff]
    %v468 = vld [vmem:[#allocation7 + $0x968] sm:$0xff]
    %v469 = vld [vmem:[#allocation7 + $0x970] sm:$0xff]
    %v470 = vld [vmem:[#allocation7 + $0x978] sm:$0xff]
    %v471 = vld [vmem:[#allocation7 + $0x980] sm:$0xff]
    %v472 = vld [vmem:[#allocation7 + $0x988] sm:$0xff]
    %v473 = vld [vmem:[#allocation7 + $0x990] sm:$0xff]
    %v474 = vld [vmem:[#allocation7 + $0x998] sm:$0xff]
    %v475 = vld [vmem:[#allocation7 + $0x9a0] sm:$0xff]
    %v476 = vld [vmem:[#allocation7 + $0x9a8] sm:$0xff]
    %v477 = vld [vmem:[#allocation7 + $0x9b0] sm:$0xff]
    %v478 = vld [vmem:[#allocation7 + $0x9b8] sm:$0xff]
    %v479 = vld [vmem:[#allocation7 + $0x9c0] sm:$0xff]
    %v480 = vld [vmem:[#allocation7 + $0x9c8] sm:$0xff]
    %v481 = vld [vmem:[#allocation7 + $0x9d0] sm:$0xff]
    %v482 = vld [vmem:[#allocation7 + $0x9d8] sm:$0xff]
    %v483 = vld [vmem:[#allocation7 + $0x9e0] sm:$0xff]
    %v484 = vld [vmem:[#allocation7 + $0x9e8] sm:$0xff]
    %v485 = vld [vmem:[#allocation7 + $0x9f0] sm:$0xff]
    %v486 = vld [vmem:[#allocation7 + $0x9f8] sm:$0xff]
    %v487 = vld [vmem:[#allocation7 + $0xa00] sm:$0xff]
    %v488 = vld [vmem:[#allocation7 + $0xa08] sm:$0xff]
    %v489 = vld [vmem:[#allocation7 + $0xa10] sm:$0xff]
    %v490 = vld [vmem:[#allocation7 + $0xa18] sm:$0xff]
    %v491 = vld [vmem:[#allocation7 + $0xa20] sm:$0xff]
    %v492 = vld [vmem:[#allocation7 + $0xa28] sm:$0xff]
    %v493 = vld [vmem:[#allocation7 + $0xa30] sm:$0xff]
    %v494 = vld [vmem:[#allocation7 + $0xa38] sm:$0xff]
    %v495 = vld [vmem:[#allocation7 + $0xa40] sm:$0xff]
    %v496 = vld [vmem:[#allocation7 + $0xa48] sm:$0xff]
    %v497 = vld [vmem:[#allocation7 + $0xa50] sm:$0xff]
    %v498 = vld [vmem:[#allocation7 + $0xa58] sm:$0xff]
    %v499 = vld [vmem:[#allocation7 + $0xa60] sm:$0xff]
    %v500 = vld [vmem:[#allocation7 + $0xa68] sm:$0xff]
    %v501 = vld [vmem:[#allocation7 + $0xa70] sm:$0xff]
    %v502 = vld [vmem:[#allocation7 + $0xa78] sm:$0xff]
    %v503 = vld [vmem:[#allocation7 + $0xa80] sm:$0xff]
    %v504 = vld [vmem:[#allocation7 + $0xa88] sm:$0xff]
    %v505 = vld [vmem:[#allocation7 + $0xa90] sm:$0xff]
    %v506 = vld [vmem:[#allocation7 + $0xa98] sm:$0xff]
    %v507 = vld [vmem:[#allocation7 + $0xaa0] sm:$0xff]
    %v508 = vld [vmem:[#allocation7 + $0xaa8] sm:$0xff]
    %v509 = vld [vmem:[#allocation7 + $0xab0] sm:$0xff]
    %v510 = vld [vmem:[#allocation7 + $0xab8] sm:$0xff]
    %v511 = vld [vmem:[#allocation7 + $0xac0] sm:$0xff]
    %v512 = vld [vmem:[#allocation7 + $0xac8] sm:$0xff]
    %v513 = vld [vmem:[#allocation7 + $0xad0] sm:$0xff]
    %v514 = vld [vmem:[#allocation7 + $0xad8] sm:$0xff]
    %v515 = vld [vmem:[#allocation7 + $0xae0] sm:$0xff]
    %v516 = vld [vmem:[#allocation7 + $0xae8] sm:$0xff]
    %v517 = vld [vmem:[#allocation7 + $0xaf0] sm:$0xff]
    %v518 = vld [vmem:[#allocation7 + $0xaf8] sm:$0xff]
    %v519 = vld [vmem:[#allocation7 + $0xb00] sm:$0xff]
    %v520 = vld [vmem:[#allocation7 + $0xb08] sm:$0xff]
    %v521 = vld [vmem:[#allocation7 + $0xb10] sm:$0xff]
    %v522 = vld [vmem:[#allocation7 + $0xb18] sm:$0xff]
    %v523 = vld [vmem:[#allocation7 + $0xb20] sm:$0xff]
    %v524 = vld [vmem:[#allocation7 + $0xb28] sm:$0xff]
    %v525 = vld [vmem:[#allocation7 + $0xb30] sm:$0xff]
    %v526 = vld [vmem:[#allocation7 + $0xb38] sm:$0xff]
    %v527 = vld [vmem:[#allocation7 + $0xb40] sm:$0xff]
    %v528 = vld [vmem:[#allocation7 + $0xb48] sm:$0xff]
    %v529 = vld [vmem:[#allocation7 + $0xb50] sm:$0xff]
    %v530 = vld [vmem:[#allocation7 + $0xb58] sm:$0xff]
    %v531 = vld [vmem:[#allocation7 + $0xb60] sm:$0xff]
    %v532 = vld [vmem:[#allocation7 + $0xb68] sm:$0xff]
    %v533 = vld [vmem:[#allocation7 + $0xb70] sm:$0xff]
    %v534 = vld [vmem:[#allocation7 + $0xb78] sm:$0xff]
    %v535 = vld [vmem:[#allocation7 + $0xb80] sm:$0xff]
    %v536 = vld [vmem:[#allocation7 + $0xb88] sm:$0xff]
    %v537 = vld [vmem:[#allocation7 + $0xb90] sm:$0xff]
    %v538 = vld [vmem:[#allocation7 + $0xb98] sm:$0xff]
    %v539 = vld [vmem:[#allocation7 + $0xba0] sm:$0xff]
    %v540 = vld [vmem:[#allocation7 + $0xba8] sm:$0xff]
    %v541 = vld [vmem:[#allocation7 + $0xbb0] sm:$0xff]
    %v542 = vld [vmem:[#allocation7 + $0xbb8] sm:$0xff]
    %v543 = vld [vmem:[#allocation7 + $0xbc0] sm:$0xff]
    %v544 = vld [vmem:[#allocation7 + $0xbc8] sm:$0xff]
    %v545 = vld [vmem:[#allocation7 + $0xbd0] sm:$0xff]
    %v546 = vld [vmem:[#allocation7 + $0xbd8] sm:$0xff]
    %v547 = vld [vmem:[#allocation7 + $0xbe0] sm:$0xff]
    %v548 = vld [vmem:[#allocation7 + $0xbe8] sm:$0xff]
    %v549 = vld [vmem:[#allocation7 + $0xbf0] sm:$0xff]
    %v550 = vld [vmem:[#allocation7 + $0xbf8] sm:$0xff]
    %v551 = vld [vmem:[#allocation7 + $0xc00] sm:$0xff]
    %v552 = vld [vmem:[#allocation7 + $0xc08] sm:$0xff]
    %v553 = vld [vmem:[#allocation7 + $0xc10] sm:$0xff]
    %v554 = vld [vmem:[#allocation7 + $0xc18] sm:$0xff]
    %v555 = vld [vmem:[#allocation7 + $0xc20] sm:$0xff]
    %v556 = vld [vmem:[#allocation7 + $0xc28] sm:$0xff]
    %v557 = vld [vmem:[#allocation7 + $0xc30] sm:$0xff]
    %v558 = vld [vmem:[#allocation7 + $0xc38] sm:$0xff]
    %v559 = vld [vmem:[#allocation7 + $0xc40] sm:$0xff]
    %v560 = vld [vmem:[#allocation7 + $0xc48] sm:$0xff]
    %v561 = vld [vmem:[#allocation7 + $0xc50] sm:$0xff]
    %v562 = vld [vmem:[#allocation7 + $0xc58] sm:$0xff]
    %v563 = vld [vmem:[#allocation7 + $0xc60] sm:$0xff]
    %v564 = vld [vmem:[#allocation7 + $0xc68] sm:$0xff]
    %v565 = vld [vmem:[#allocation7 + $0xc70] sm:$0xff]
    %v566 = vld [vmem:[#allocation7 + $0xc78] sm:$0xff]
    %v567 = vld [vmem:[#allocation7 + $0xc80] sm:$0xff]
    %v568 = vld [vmem:[#allocation7 + $0xc88] sm:$0xff]
    %v569 = vld [vmem:[#allocation7 + $0xc90] sm:$0xff]
    %v570 = vld [vmem:[#allocation7 + $0xc98] sm:$0xff]
    %v571 = vld [vmem:[#allocation7 + $0xca0] sm:$0xff]
    %v572 = vld [vmem:[#allocation7 + $0xca8] sm:$0xff]
    %v573 = vld [vmem:[#allocation7 + $0xcb0] sm:$0xff]
    %v574 = vld [vmem:[#allocation7 + $0xcb8] sm:$0xff]
    %v575 = vld [vmem:[#allocation7 + $0xcc0] sm:$0xff]
    %v576 = vld [vmem:[#allocation7 + $0xcc8] sm:$0xff]
    %v577 = vld [vmem:[#allocation7 + $0xcd0] sm:$0xff]
    %v578 = vld [vmem:[#allocation7 + $0xcd8] sm:$0xff]
    %v579 = vld [vmem:[#allocation7 + $0xce0] sm:$0xff]
    %v580 = vld [vmem:[#allocation7 + $0xce8] sm:$0xff]
    %v581 = vld [vmem:[#allocation7 + $0xcf0] sm:$0xff]
    %v582 = vld [vmem:[#allocation7 + $0xcf8] sm:$0xff]
    %v583 = vld [vmem:[#allocation7 + $0xd00] sm:$0xff]
    %v584 = vld [vmem:[#allocation7 + $0xd08] sm:$0xff]
    %v585 = vld [vmem:[#allocation7 + $0xd10] sm:$0xff]
    %v586 = vld [vmem:[#allocation7 + $0xd18] sm:$0xff]
    %v587 = vld [vmem:[#allocation7 + $0xd20] sm:$0xff]
    %v588 = vld [vmem:[#allocation7 + $0xd28] sm:$0xff]
    %v589 = vld [vmem:[#allocation7 + $0xd30] sm:$0xff]
    %v590 = vld [vmem:[#allocation7 + $0xd38] sm:$0xff]
    %v591 = vld [vmem:[#allocation7 + $0xd40] sm:$0xff]
    %v592 = vld [vmem:[#allocation7 + $0xd48] sm:$0xff]
    %v593 = vld [vmem:[#allocation7 + $0xd50] sm:$0xff]
    %v594 = vld [vmem:[#allocation7 + $0xd58] sm:$0xff]
    %v595 = vld [vmem:[#allocation7 + $0xd60] sm:$0xff]
    %v596 = vld [vmem:[#allocation7 + $0xd68] sm:$0xff]
    %v597 = vld [vmem:[#allocation7 + $0xd70] sm:$0xff]
    %v598 = vld [vmem:[#allocation7 + $0xd78] sm:$0xff]
    %v599 = vld [vmem:[#allocation7 + $0xd80] sm:$0xff]
    %v600 = vld [vmem:[#allocation7 + $0xd88] sm:$0xff]
    %v601 = vld [vmem:[#allocation7 + $0xd90] sm:$0xff]
    %v602 = vld [vmem:[#allocation7 + $0xd98] sm:$0xff]
    %v603 = vld [vmem:[#allocation7 + $0xda0] sm:$0xff]
    %v604 = vld [vmem:[#allocation7 + $0xda8] sm:$0xff]
    %v605 = vld [vmem:[#allocation7 + $0xdb0] sm:$0xff]
    %v606 = vld [vmem:[#allocation7 + $0xdb8] sm:$0xff]
    %v607 = vld [vmem:[#allocation7 + $0xdc0] sm:$0xff]
    %v608 = vld [vmem:[#allocation7 + $0xdc8] sm:$0xff]
    %v609 = vld [vmem:[#allocation7 + $0xdd0] sm:$0xff]
    %v610 = vld [vmem:[#allocation7 + $0xdd8] sm:$0xff]
    %v611 = vld [vmem:[#allocation7 + $0xde0] sm:$0xff]
    %v612 = vld [vmem:[#allocation7 + $0xde8] sm:$0xff]
    %v613 = vld [vmem:[#allocation7 + $0xdf0] sm:$0xff]
    %v614 = vld [vmem:[#allocation7 + $0xdf8] sm:$0xff]
    %v615 = vld [vmem:[#allocation8] sm:$0xff]
    %v617 = vlaneseq
    %v618 = vshrl.u32 %v617, 7
    %v619 = vsub.s32 0, %v618
    %v620 = vrot.slane %v615, %v619
    %v621 = vlaneseq
    %v622 = vshrl.u32 %v621, 7
    %v623 = vsub.s32 1, %v622
    %v624 = vrot.slane %v615, %v623
    %v625 = vlaneseq
    %v626 = vshrl.u32 %v625, 7
    %v627 = vsub.s32 2, %v626
    %v628 = vrot.slane %v615, %v627
    %v629 = vlaneseq
    %v630 = vshrl.u32 %v629, 7
    %v631 = vsub.s32 3, %v630
    %v632 = vrot.slane %v615, %v631
    %v633 = vlaneseq
    %v634 = vshrl.u32 %v633, 7
    %v635 = vsub.s32 4, %v634
    %v636 = vrot.slane %v615, %v635
    %v637 = vlaneseq
    %v638 = vshrl.u32 %v637, 7
    %v639 = vsub.s32 5, %v638
    %v640 = vrot.slane %v615, %v639
    %v641 = vlaneseq
    %v642 = vshrl.u32 %v641, 7
    %v643 = vsub.s32 6, %v642
    %v644 = vrot.slane %v615, %v643
    %652 = vmatprep.subr.mxu0 %v168
    %653 = vmatpush1.msra.mxu0 %v167
    %654 = vmatprep.subr.mxu0 %v175
    %655 = vmatpush1.msra.mxu0 %v174
    %656 = vmatprep.subr.mxu0 %v182
    %657 = vmatpush1.msra.mxu0 %v181
    %658 = vmatprep.subr.mxu0 %v189
    %659 = vmatpush1.msra.mxu0 %v188
    %660 = vmatprep.subr.mxu0 %v196
    %661 = vmatpush1.msra.mxu0 %v195
    %662 = vmatprep.subr.mxu0 %v203
    %663 = vmatpush1.msra.mxu0 %v202
    %664 = vmatprep.subr.mxu0 %v210
    %665 = vmatpush1.msra.mxu0 %v209
    %666 = vmatprep.subr.mxu0 %v217
    %667 = vmatpush1.msra.mxu0 %v216
    %668 = vmatprep.subr.mxu0 %v224
    %669 = vmatpush1.msra.mxu0 %v223
    %670 = vmatprep.subr.mxu0 %v231
    %671 = vmatpush1.msra.mxu0 %v230
    %672 = vmatprep.subr.mxu0 %v238
    %673 = vmatpush1.msra.mxu0 %v237
    %674 = vmatprep.subr.mxu0 %v245
    %675 = vmatpush1.msra.mxu0 %v244
    %676 = vmatprep.subr.mxu0 %v252
    %677 = vmatpush1.msra.mxu0 %v251
    %678 = vmatprep.subr.mxu0 %v259
    %679 = vmatpush1.msra.mxu0 %v258
    %680 = vmatprep.subr.mxu0 %v266
    %681 = vmatpush1.msra.mxu0 %v265
    %682 = vmatprep.subr.mxu0 %v273
    %683 = vmatpush1.msra.mxu0 %v272
    %684 = vmatprep.subr.mxu0 %v280
    %685 = vmatpush1.msra.mxu0 %v279
    %686 = vmatprep.subr.mxu0 %v287
    %687 = vmatpush1.msra.mxu0 %v286
    %688 = vmatprep.subr.mxu0 %v294
    %689 = vmatpush1.msra.mxu0 %v293
    %690 = vmatprep.subr.mxu0 %v301
    %691 = vmatpush1.msra.mxu0 %v300
    %692 = vmatprep.subr.mxu0 %v308
    %693 = vmatpush1.msra.mxu0 %v307
    %694 = vmatprep.subr.mxu0 %v315
    %695 = vmatpush1.msra.mxu0 %v314
    %696 = vmatprep.subr.mxu0 %v322
    %697 = vmatpush1.msra.mxu0 %v321
    %698 = vmatprep.subr.mxu0 %v329
    %699 = vmatpush1.msra.mxu0 %v328
    %700 = vmatprep.subr.mxu0 %v336
    %701 = vmatpush1.msra.mxu0 %v335
    %702 = vmatprep.subr.mxu0 %v343
    %703 = vmatpush1.msra.mxu0 %v342
    %704 = vmatprep.subr.mxu0 %v350
    %705 = vmatpush1.msra.mxu0 %v349
    %706 = vmatprep.subr.mxu0 %v357
    %707 = vmatpush1.msra.mxu0 %v356
    %708 = vmatprep.subr.mxu0 %v364
    %709 = vmatpush1.msra.mxu0 %v363
    %710 = vmatprep.subr.mxu0 %v371
    %711 = vmatpush1.msra.mxu0 %v370
    %712 = vmatprep.subr.mxu0 %v378
    %713 = vmatpush1.msra.mxu0 %v377
    %714 = vmatprep.subr.mxu0 %v385
    %715 = vmatpush1.msra.mxu0 %v384
    %716 = vmatprep.mubr.f32.mxu0 %v164
    %717 = vmatmul.mubr.f32.gmra.mrb[0].mxu0 %v163
    %v718 = vpop.f32.mrb[0].mxu0
    %v719 = vadd.f32 %v620, %v718
    %v720 = vpop.f32.mrb[0].mxu0
    %v721 = vadd.f32 %v624, %v720
    %722 = vdwg.mxu0
    %723 = vmatprep.subr.mxu0 %v392
    %724 = vmatpush1.msra.mxu0 %v391
    %725 = vmatprep.subr.mxu0 %v399
    %726 = vmatpush1.msra.mxu0 %v398
    %727 = vmatprep.subr.mxu0 %v406
    %728 = vmatpush1.msra.mxu0 %v405
    %729 = vmatprep.subr.mxu0 %v413
    %730 = vmatpush1.msra.mxu0 %v412
    %731 = vmatprep.subr.mxu0 %v420
    %732 = vmatpush1.msra.mxu0 %v419
    %733 = vmatprep.subr.mxu0 %v427
    %734 = vmatpush1.msra.mxu0 %v426
    %735 = vmatprep.subr.mxu0 %v434
    %736 = vmatpush1.msra.mxu0 %v433
    %737 = vmatprep.subr.mxu0 %v441
    %738 = vmatpush1.msra.mxu0 %v440
    %739 = vmatprep.subr.mxu0 %v448
    %740 = vmatpush1.msra.mxu0 %v447
    %741 = vmatprep.subr.mxu0 %v455
    %742 = vmatpush1.msra.mxu0 %v454
    %743 = vmatprep.subr.mxu0 %v462
    %744 = vmatpush1.msra.mxu0 %v461
    %745 = vmatprep.subr.mxu0 %v469
    %746 = vmatpush1.msra.mxu0 %v468
    %747 = vmatprep.subr.mxu0 %v476
    %748 = vmatpush1.msra.mxu0 %v475
    %749 = vmatprep.subr.mxu0 %v483
    %750 = vmatpush1.msra.mxu0 %v482
    %751 = vmatprep.subr.mxu0 %v490
    %752 = vmatpush1.msra.mxu0 %v489
    %753 = vmatprep.subr.mxu0 %v497
    %754 = vmatpush1.msra.mxu0 %v496
    %755 = vmatprep.subr.mxu0 %v504
    %756 = vmatpush1.msra.mxu0 %v503
    %757 = vmatprep.subr.mxu0 %v511
    %758 = vmatpush1.msra.mxu0 %v510
    %759 = vmatprep.subr.mxu0 %v518
    %760 = vmatpush1.msra.mxu0 %v517
    %761 = vmatprep.subr.mxu0 %v525
    %762 = vmatpush1.msra.mxu0 %v524
    %763 = vmatprep.subr.mxu0 %v532
    %764 = vmatpush1.msra.mxu0 %v531
    %765 = vmatprep.subr.mxu0 %v539
    %766 = vmatpush1.msra.mxu0 %v538
    %767 = vmatprep.subr.mxu0 %v546
    %768 = vmatpush1.msra.mxu0 %v545
    %769 = vmatprep.subr.mxu0 %v553
    %770 = vmatpush1.msra.mxu0 %v552
    %771 = vmatprep.subr.mxu0 %v560
    %772 = vmatpush1.msra.mxu0 %v559
    %773 = vmatprep.subr.mxu0 %v567
    %774 = vmatpush1.msra.mxu0 %v566
    %775 = vmatprep.subr.mxu0 %v574
    %776 = vmatpush1.msra.mxu0 %v573
    %777 = vmatprep.subr.mxu0 %v581
    %778 = vmatpush1.msra.mxu0 %v580
    %779 = vmatprep.subr.mxu0 %v588
    %780 = vmatpush1.msra.mxu0 %v587
    %781 = vmatprep.subr.mxu0 %v595
    %782 = vmatpush1.msra.mxu0 %v594
    %783 = vmatprep.subr.mxu0 %v602
    %784 = vmatpush1.msra.mxu0 %v601
    %785 = vmatprep.subr.mxu0 %v609
    %786 = vmatpush1.msra.mxu0 %v608
    %787 = vmatprep.mubr.f32.mxu0 %v166
    %788 = vmatmul.mubr.f32.gmra.mrb[0].mxu0 %v165
    %v789 = vpop.f32.mrb[0].mxu0
    %v790 = vadd.f32 %v719, %v789
    %v791 = vpop.f32.mrb[0].mxu0
    %v792 = vadd.f32 %v721, %v791
    %793 = vdwg.mxu0
    %794 = vmatprep.subr.mxu0 %v170
    %795 = vmatpush1.msra.mxu0 %v169
    %796 = vmatprep.subr.mxu0 %v177
    %797 = vmatpush1.msra.mxu0 %v176
    %798 = vmatprep.subr.mxu0 %v184
    %799 = vmatpush1.msra.mxu0 %v183
    %800 = vmatprep.subr.mxu0 %v191
    %801 = vmatpush1.msra.mxu0 %v190
    %802 = vmatprep.subr.mxu0 %v198
    %803 = vmatpush1.msra.mxu0 %v197
    %804 = vmatprep.subr.mxu0 %v205
    %805 = vmatpush1.msra.mxu0 %v204
    %806 = vmatprep.subr.mxu0 %v212
    %807 = vmatpush1.msra.mxu0 %v211
    %808 = vmatprep.subr.mxu0 %v219
    %809 = vmatpush1.msra.mxu0 %v218
    %810 = vmatprep.subr.mxu0 %v226
    %811 = vmatpush1.msra.mxu0 %v225
    %812 = vmatprep.subr.mxu0 %v233
    %813 = vmatpush1.msra.mxu0 %v232
    %814 = vmatprep.subr.mxu0 %v240
    %815 = vmatpush1.msra.mxu0 %v239
    %816 = vmatprep.subr.mxu0 %v247
    %817 = vmatpush1.msra.mxu0 %v246
    %818 = vmatprep.subr.mxu0 %v254
    %819 = vmatpush1.msra.mxu0 %v253
    %820 = vmatprep.subr.mxu0 %v261
    %821 = vmatpush1.msra.mxu0 %v260
    %822 = vmatprep.subr.mxu0 %v268
    %823 = vmatpush1.msra.mxu0 %v267
    %824 = vmatprep.subr.mxu0 %v275
    %825 = vmatpush1.msra.mxu0 %v274
    %826 = vmatprep.subr.mxu0 %v282
    %827 = vmatpush1.msra.mxu0 %v281
    %828 = vmatprep.subr.mxu0 %v289
    %829 = vmatpush1.msra.mxu0 %v288
    %830 = vmatprep.subr.mxu0 %v296
    %831 = vmatpush1.msra.mxu0 %v295
    %832 = vmatprep.subr.mxu0 %v303
    %833 = vmatpush1.msra.mxu0 %v302
    %834 = vmatprep.subr.mxu0 %v310
    %835 = vmatpush1.msra.mxu0 %v309
    %836 = vmatprep.subr.mxu0 %v317
    %837 = vmatpush1.msra.mxu0 %v316
    %838 = vmatprep.subr.mxu0 %v324
    %839 = vmatpush1.msra.mxu0 %v323
    %840 = vmatprep.subr.mxu0 %v331
    %841 = vmatpush1.msra.mxu0 %v330
    %842 = vmatprep.subr.mxu0 %v338
    %843 = vmatpush1.msra.mxu0 %v337
    %844 = vmatprep.subr.mxu0 %v345
    %845 = vmatpush1.msra.mxu0 %v344
    %846 = vmatprep.subr.mxu0 %v352
    %847 = vmatpush1.msra.mxu0 %v351
    %848 = vmatprep.subr.mxu0 %v359
    %849 = vmatpush1.msra.mxu0 %v358
    %850 = vmatprep.subr.mxu0 %v366
    %851 = vmatpush1.msra.mxu0 %v365
    %852 = vmatprep.subr.mxu0 %v373
    %853 = vmatpush1.msra.mxu0 %v372
    %854 = vmatprep.subr.mxu0 %v380
    %855 = vmatpush1.msra.mxu0 %v379
    %856 = vmatprep.subr.mxu0 %v387
    %857 = vmatpush1.msra.mxu0 %v386
    %858 = vmatprep.mubr.f32.mxu0 %v164
    %859 = vmatmul.mubr.f32.gmra.mrb[0].mxu0 %v163
    %v860 = vpop.f32.mrb[0].mxu0
    %v861 = vadd.f32 %v628, %v860
    %v862 = vpop.f32.mrb[0].mxu0
    %v863 = vadd.f32 %v632, %v862
    %864 = vdwg.mxu0
    %865 = vmatprep.subr.mxu0 %v394
    %866 = vmatpush1.msra.mxu0 %v393
    %867 = vmatprep.subr.mxu0 %v401
    %868 = vmatpush1.msra.mxu0 %v400
    %869 = vmatprep.subr.mxu0 %v408
    %870 = vmatpush1.msra.mxu0 %v407
    %871 = vmatprep.subr.mxu0 %v415
    %872 = vmatpush1.msra.mxu0 %v414
    %873 = vmatprep.subr.mxu0 %v422
    %874 = vmatpush1.msra.mxu0 %v421
    %875 = vmatprep.subr.mxu0 %v429
    %876 = vmatpush1.msra.mxu0 %v428
    %877 = vmatprep.subr.mxu0 %v436
    %878 = vmatpush1.msra.mxu0 %v435
    %879 = vmatprep.subr.mxu0 %v443
    %880 = vmatpush1.msra.mxu0 %v442
    %881 = vmatprep.subr.mxu0 %v450
    %882 = vmatpush1.msra.mxu0 %v449
    %883 = vmatprep.subr.mxu0 %v457
    %884 = vmatpush1.msra.mxu0 %v456
    %885 = vmatprep.subr.mxu0 %v464
    %886 = vmatpush1.msra.mxu0 %v463
    %887 = vmatprep.subr.mxu0 %v471
    %888 = vmatpush1.msra.mxu0 %v470
    %889 = vmatprep.subr.mxu0 %v478
    %890 = vmatpush1.msra.mxu0 %v477
    %891 = vmatprep.subr.mxu0 %v485
    %892 = vmatpush1.msra.mxu0 %v484
    %893 = vmatprep.subr.mxu0 %v492
    %894 = vmatpush1.msra.mxu0 %v491
    %895 = vmatprep.subr.mxu0 %v499
    %896 = vmatpush1.msra.mxu0 %v498
    %897 = vmatprep.subr.mxu0 %v506
    %898 = vmatpush1.msra.mxu0 %v505
    %899 = vmatprep.subr.mxu0 %v513
    %900 = vmatpush1.msra.mxu0 %v512
    %901 = vmatprep.subr.mxu0 %v520
    %902 = vmatpush1.msra.mxu0 %v519
    %903 = vmatprep.subr.mxu0 %v527
    %904 = vmatpush1.msra.mxu0 %v526
    %905 = vmatprep.subr.mxu0 %v534
    %906 = vmatpush1.msra.mxu0 %v533
    %907 = vmatprep.subr.mxu0 %v541
    %908 = vmatpush1.msra.mxu0 %v540
    %909 = vmatprep.subr.mxu0 %v548
    %910 = vmatpush1.msra.mxu0 %v547
    %911 = vmatprep.subr.mxu0 %v555
    %912 = vmatpush1.msra.mxu0 %v554
    %913 = vmatprep.subr.mxu0 %v562
    %914 = vmatpush1.msra.mxu0 %v561
    %915 = vmatprep.subr.mxu0 %v569
    %916 = vmatpush1.msra.mxu0 %v568
    %917 = vmatprep.subr.mxu0 %v576
    %918 = vmatpush1.msra.mxu0 %v575
    %919 = vmatprep.subr.mxu0 %v583
    %920 = vmatpush1.msra.mxu0 %v582
    %921 = vmatprep.subr.mxu0 %v590
    %922 = vmatpush1.msra.mxu0 %v589
    %923 = vmatprep.subr.mxu0 %v597
    %924 = vmatpush1.msra.mxu0 %v596
    %925 = vmatprep.subr.mxu0 %v604
    %926 = vmatpush1.msra.mxu0 %v603
    %927 = vmatprep.subr.mxu0 %v611
    %928 = vmatpush1.msra.mxu0 %v610
    %929 = vmatprep.mubr.f32.mxu0 %v166
    %930 = vmatmul.mubr.f32.gmra.mrb[0].mxu0 %v165
    %v931 = vpop.f32.mrb[0].mxu0
    %v932 = vadd.f32 %v861, %v931
    %v933 = vpop.f32.mrb[0].mxu0
    %v934 = vadd.f32 %v863, %v933
    %935 = vdwg.mxu0
    %936 = vmatprep.subr.mxu0 %v172
    %937 = vmatpush1.msra.mxu0 %v171
    %938 = vmatprep.subr.mxu0 %v179
    %939 = vmatpush1.msra.mxu0 %v178
    %940 = vmatprep.subr.mxu0 %v186
    %941 = vmatpush1.msra.mxu0 %v185
    %942 = vmatprep.subr.mxu0 %v193
    %943 = vmatpush1.msra.mxu0 %v192
    %944 = vmatprep.subr.mxu0 %v200
    %945 = vmatpush1.msra.mxu0 %v199
    %946 = vmatprep.subr.mxu0 %v207
    %947 = vmatpush1.msra.mxu0 %v206
    %948 = vmatprep.subr.mxu0 %v214
    %949 = vmatpush1.msra.mxu0 %v213
    %950 = vmatprep.subr.mxu0 %v221
    %951 = vmatpush1.msra.mxu0 %v220
    %952 = vmatprep.subr.mxu0 %v228
    %953 = vmatpush1.msra.mxu0 %v227
    %954 = vmatprep.subr.mxu0 %v235
    %955 = vmatpush1.msra.mxu0 %v234
    %956 = vmatprep.subr.mxu0 %v242
    %957 = vmatpush1.msra.mxu0 %v241
    %958 = vmatprep.subr.mxu0 %v249
    %959 = vmatpush1.msra.mxu0 %v248
    %960 = vmatprep.subr.mxu0 %v256
    %961 = vmatpush1.msra.mxu0 %v255
    %962 = vmatprep.subr.mxu0 %v263
    %963 = vmatpush1.msra.mxu0 %v262
    %964 = vmatprep.subr.mxu0 %v270
    %965 = vmatpush1.msra.mxu0 %v269
    %966 = vmatprep.subr.mxu0 %v277
    %967 = vmatpush1.msra.mxu0 %v276
    %968 = vmatprep.subr.mxu0 %v284
    %969 = vmatpush1.msra.mxu0 %v283
    %970 = vmatprep.subr.mxu0 %v291
    %971 = vmatpush1.msra.mxu0 %v290
    %972 = vmatprep.subr.mxu0 %v298
    %973 = vmatpush1.msra.mxu0 %v297
    %974 = vmatprep.subr.mxu0 %v305
    %975 = vmatpush1.msra.mxu0 %v304
    %976 = vmatprep.subr.mxu0 %v312
    %977 = vmatpush1.msra.mxu0 %v311
    %978 = vmatprep.subr.mxu0 %v319
    %979 = vmatpush1.msra.mxu0 %v318
    %980 = vmatprep.subr.mxu0 %v326
    %981 = vmatpush1.msra.mxu0 %v325
    %982 = vmatprep.subr.mxu0 %v333
    %983 = vmatpush1.msra.mxu0 %v332
    %984 = vmatprep.subr.mxu0 %v340
    %985 = vmatpush1.msra.mxu0 %v339
    %986 = vmatprep.subr.mxu0 %v347
    %987 = vmatpush1.msra.mxu0 %v346
    %988 = vmatprep.subr.mxu0 %v354
    %989 = vmatpush1.msra.mxu0 %v353
    %990 = vmatprep.subr.mxu0 %v361
    %991 = vmatpush1.msra.mxu0 %v360
    %992 = vmatprep.subr.mxu0 %v368
    %993 = vmatpush1.msra.mxu0 %v367
    %994 = vmatprep.subr.mxu0 %v375
    %995 = vmatpush1.msra.mxu0 %v374
    %996 = vmatprep.subr.mxu0 %v382
    %997 = vmatpush1.msra.mxu0 %v381
    %998 = vmatprep.subr.mxu0 %v389
    %999 = vmatpush1.msra.mxu0 %v388
    %1000 = vmatprep.mubr.f32.mxu0 %v164
    %1001 = vmatmul.mubr.f32.gmra.mrb[0].mxu0 %v163
    %v1002 = vpop.f32.mrb[0].mxu0
    %v1003 = vadd.f32 %v636, %v1002
    %v1004 = vpop.f32.mrb[0].mxu0
    %v1005 = vadd.f32 %v640, %v1004
    %1006 = vdwg.mxu0
    %1007 = vmatprep.subr.mxu0 %v396
    %1008 = vmatpush1.msra.mxu0 %v395
    %1009 = vmatprep.subr.mxu0 %v403
    %1010 = vmatpush1.msra.mxu0 %v402
    %1011 = vmatprep.subr.mxu0 %v410
    %1012 = vmatpush1.msra.mxu0 %v409
    %1013 = vmatprep.subr.mxu0 %v417
    %1014 = vmatpush1.msra.mxu0 %v416
    %1015 = vmatprep.subr.mxu0 %v424
    %1016 = vmatpush1.msra.mxu0 %v423
    %1017 = vmatprep.subr.mxu0 %v431
    %1018 = vmatpush1.msra.mxu0 %v430
    %1019 = vmatprep.subr.mxu0 %v438
    %1020 = vmatpush1.msra.mxu0 %v437
    %1021 = vmatprep.subr.mxu0 %v445
    %1022 = vmatpush1.msra.mxu0 %v444
    %1023 = vmatprep.subr.mxu0 %v452
    %1024 = vmatpush1.msra.mxu0 %v451
    %1025 = vmatprep.subr.mxu0 %v459
    %1026 = vmatpush1.msra.mxu0 %v458
    %1027 = vmatprep.subr.mxu0 %v466
    %1028 = vmatpush1.msra.mxu0 %v465
    %1029 = vmatprep.subr.mxu0 %v473
    %1030 = vmatpush1.msra.mxu0 %v472
    %1031 = vmatprep.subr.mxu0 %v480
    %1032 = vmatpush1.msra.mxu0 %v479
    %1033 = vmatprep.subr.mxu0 %v487
    %1034 = vmatpush1.msra.mxu0 %v486
    %1035 = vmatprep.subr.mxu0 %v494
    %1036 = vmatpush1.msra.mxu0 %v493
    %1037 = vmatprep.subr.mxu0 %v501
    %1038 = vmatpush1.msra.mxu0 %v500
    %1039 = vmatprep.subr.mxu0 %v508
    %1040 = vmatpush1.msra.mxu0 %v507
    %1041 = vmatprep.subr.mxu0 %v515
    %1042 = vmatpush1.msra.mxu0 %v514
    %1043 = vmatprep.subr.mxu0 %v522
    %1044 = vmatpush1.msra.mxu0 %v521
    %1045 = vmatprep.subr.mxu0 %v529
    %1046 = vmatpush1.msra.mxu0 %v528
    %1047 = vmatprep.subr.mxu0 %v536
    %1048 = vmatpush1.msra.mxu0 %v535
    %1049 = vmatprep.subr.mxu0 %v543
    %1050 = vmatpush1.msra.mxu0 %v542
    %1051 = vmatprep.subr.mxu0 %v550
    %1052 = vmatpush1.msra.mxu0 %v549
    %1053 = vmatprep.subr.mxu0 %v557
    %1054 = vmatpush1.msra.mxu0 %v556
    %1055 = vmatprep.subr.mxu0 %v564
    %1056 = vmatpush1.msra.mxu0 %v563
    %1057 = vmatprep.subr.mxu0 %v571
    %1058 = vmatpush1.msra.mxu0 %v570
    %1059 = vmatprep.subr.mxu0 %v578
    %1060 = vmatpush1.msra.mxu0 %v577
    %1061 = vmatprep.subr.mxu0 %v585
    %1062 = vmatpush1.msra.mxu0 %v584
    %1063 = vmatprep.subr.mxu0 %v592
    %1064 = vmatpush1.msra.mxu0 %v591
    %1065 = vmatprep.subr.mxu0 %v599
    %1066 = vmatpush1.msra.mxu0 %v598
    %1067 = vmatprep.subr.mxu0 %v606
    %1068 = vmatpush1.msra.mxu0 %v605
    %1069 = vmatprep.subr.mxu0 %v613
    %1070 = vmatpush1.msra.mxu0 %v612
    %1071 = vmatprep.mubr.f32.mxu0 %v166
    %1072 = vmatmul.mubr.f32.gmra.mrb[0].mxu0 %v165
    %v1073 = vpop.f32.mrb[0].mxu0
    %v1074 = vadd.f32 %v1003, %v1073
    %v1075 = vpop.f32.mrb[0].mxu0
    %v1076 = vadd.f32 %v1005, %v1075
    %1077 = vdwg.mxu0
    %1078 = vmatprep.subr.mxu0 0.0
    %1079 = vmatpush1.msra.mxu0 %v173
    %1080 = vmatprep.subr.mxu0 0.0
    %1081 = vmatpush1.msra.mxu0 %v180
    %1082 = vmatprep.subr.mxu0 0.0
    %1083 = vmatpush1.msra.mxu0 %v187
    %1084 = vmatprep.subr.mxu0 0.0
    %1085 = vmatpush1.msra.mxu0 %v194
    %1086 = vmatprep.subr.mxu0 0.0
    %1087 = vmatpush1.msra.mxu0 %v201
    %1088 = vmatprep.subr.mxu0 0.0
    %1089 = vmatpush1.msra.mxu0 %v208
    %1090 = vmatprep.subr.mxu0 0.0
    %1091 = vmatpush1.msra.mxu0 %v215
    %1092 = vmatprep.subr.mxu0 0.0
    %1093 = vmatpush1.msra.mxu0 %v222
    %1094 = vmatprep.subr.mxu0 0.0
    %1095 = vmatpush1.msra.mxu0 %v229
    %1096 = vmatprep.subr.mxu0 0.0
    %1097 = vmatpush1.msra.mxu0 %v236
    %1098 = vmatprep.subr.mxu0 0.0
    %1099 = vmatpush1.msra.mxu0 %v243
    %1100 = vmatprep.subr.mxu0 0.0
    %1101 = vmatpush1.msra.mxu0 %v250
    %1102 = vmatprep.subr.mxu0 0.0
    %1103 = vmatpush1.msra.mxu0 %v257
    %1104 = vmatprep.subr.mxu0 0.0
    %1105 = vmatpush1.msra.mxu0 %v264
    %1106 = vmatprep.subr.mxu0 0.0
    %1107 = vmatpush1.msra.mxu0 %v271
    %1108 = vmatprep.subr.mxu0 0.0
    %1109 = vmatpush1.msra.mxu0 %v278
    %1110 = vmatprep.subr.mxu0 0.0
    %1111 = vmatpush1.msra.mxu0 %v285
    %1112 = vmatprep.subr.mxu0 0.0
    %1113 = vmatpush1.msra.mxu0 %v292
    %1114 = vmatprep.subr.mxu0 0.0
    %1115 = vmatpush1.msra.mxu0 %v299
    %1116 = vmatprep.subr.mxu0 0.0
    %1117 = vmatpush1.msra.mxu0 %v306
    %1118 = vmatprep.subr.mxu0 0.0
    %1119 = vmatpush1.msra.mxu0 %v313
    %1120 = vmatprep.subr.mxu0 0.0
    %1121 = vmatpush1.msra.mxu0 %v320
    %1122 = vmatprep.subr.mxu0 0.0
    %1123 = vmatpush1.msra.mxu0 %v327
    %1124 = vmatprep.subr.mxu0 0.0
    %1125 = vmatpush1.msra.mxu0 %v334
    %1126 = vmatprep.subr.mxu0 0.0
    %1127 = vmatpush1.msra.mxu0 %v341
    %1128 = vmatprep.subr.mxu0 0.0
    %1129 = vmatpush1.msra.mxu0 %v348
    %1130 = vmatprep.subr.mxu0 0.0
    %1131 = vmatpush1.msra.mxu0 %v355
    %1132 = vmatprep.subr.mxu0 0.0
    %1133 = vmatpush1.msra.mxu0 %v362
    %1134 = vmatprep.subr.mxu0 0.0
    %1135 = vmatpush1.msra.mxu0 %v369
    %1136 = vmatprep.subr.mxu0 0.0
    %1137 = vmatpush1.msra.mxu0 %v376
    %1138 = vmatprep.subr.mxu0 0.0
    %1139 = vmatpush1.msra.mxu0 %v383
    %1140 = vmatprep.subr.mxu0 0.0
    %1141 = vmatpush1.msra.mxu0 %v390
    %1142 = vmatprep.mubr.f32.mxu0 %v164
    %1143 = vmatmul.mubr.f32.gmra.mrb[0].mxu0 %v163
    %v1144 = vpop.f32.mrb[0].mxu0
    %v1145 = vadd.f32 %v644, %v1144
    %v1146 = vpop.f32.mrb[0].mxu0
    %1147 = vdwg.mxu0
    %1148 = vmatprep.subr.mxu0 0.0
    %1149 = vmatpush1.msra.mxu0 %v397
    %1150 = vmatprep.subr.mxu0 0.0
    %1151 = vmatpush1.msra.mxu0 %v404
    %1152 = vmatprep.subr.mxu0 0.0
    %1153 = vmatpush1.msra.mxu0 %v411
    %1154 = vmatprep.subr.mxu0 0.0
    %1155 = vmatpush1.msra.mxu0 %v418
    %1156 = vmatprep.subr.mxu0 0.0
    %1157 = vmatpush1.msra.mxu0 %v425
    %1158 = vmatprep.subr.mxu0 0.0
    %1159 = vmatpush1.msra.mxu0 %v432
    %1160 = vmatprep.subr.mxu0 0.0
    %1161 = vmatpush1.msra.mxu0 %v439
    %1162 = vmatprep.subr.mxu0 0.0
    %1163 = vmatpush1.msra.mxu0 %v446
    %1164 = vmatprep.subr.mxu0 0.0
    %1165 = vmatpush1.msra.mxu0 %v453
    %1166 = vmatprep.subr.mxu0 0.0
    %1167 = vmatpush1.msra.mxu0 %v460
    %1168 = vmatprep.subr.mxu0 0.0
    %1169 = vmatpush1.msra.mxu0 %v467
    %1170 = vmatprep.subr.mxu0 0.0
    %1171 = vmatpush1.msra.mxu0 %v474
    %1172 = vmatprep.subr.mxu0 0.0
    %1173 = vmatpush1.msra.mxu0 %v481
    %1174 = vmatprep.subr.mxu0 0.0
    %1175 = vmatpush1.msra.mxu0 %v488
    %1176 = vmatprep.subr.mxu0 0.0
    %1177 = vmatpush1.msra.mxu0 %v495
    %1178 = vmatprep.subr.mxu0 0.0
    %1179 = vmatpush1.msra.mxu0 %v502
    %1180 = vmatprep.subr.mxu0 0.0
    %1181 = vmatpush1.msra.mxu0 %v509
    %1182 = vmatprep.subr.mxu0 0.0
    %1183 = vmatpush1.msra.mxu0 %v516
    %1184 = vmatprep.subr.mxu0 0.0
    %1185 = vmatpush1.msra.mxu0 %v523
    %1186 = vmatprep.subr.mxu0 0.0
    %1187 = vmatpush1.msra.mxu0 %v530
    %1188 = vmatprep.subr.mxu0 0.0
    %1189 = vmatpush1.msra.mxu0 %v537
    %1190 = vmatprep.subr.mxu0 0.0
    %1191 = vmatpush1.msra.mxu0 %v544
    %1192 = vmatprep.subr.mxu0 0.0
    %1193 = vmatpush1.msra.mxu0 %v551
    %1194 = vmatprep.subr.mxu0 0.0
    %1195 = vmatpush1.msra.mxu0 %v558
    %1196 = vmatprep.subr.mxu0 0.0
    %1197 = vmatpush1.msra.mxu0 %v565
    %1198 = vmatprep.subr.mxu0 0.0
    %1199 = vmatpush1.msra.mxu0 %v572
    %1200 = vmatprep.subr.mxu0 0.0
    %1201 = vmatpush1.msra.mxu0 %v579
    %1202 = vmatprep.subr.mxu0 0.0
    %1203 = vmatpush1.msra.mxu0 %v586
    %1204 = vmatprep.subr.mxu0 0.0
    %1205 = vmatpush1.msra.mxu0 %v593
    %1206 = vmatprep.subr.mxu0 0.0
    %1207 = vmatpush1.msra.mxu0 %v600
    %1208 = vmatprep.subr.mxu0 0.0
    %1209 = vmatpush1.msra.mxu0 %v607
    %1210 = vmatprep.subr.mxu0 0.0
    %1211 = vmatpush1.msra.mxu0 %v614
    %1212 = vmatprep.mubr.f32.mxu0 %v166
    %1213 = vmatmul.mubr.f32.gmra.mrb[0].mxu0 %v165
    %v1214 = vpop.f32.mrb[0].mxu0
    %v1215 = vadd.f32 %v1145, %v1214
    %v1216 = vpop.f32.mrb[0].mxu0
    %1217 = vdwg.mxu0
    %v1218 = vxor.u32 %v790, 2147483648
    %v1219 = vxor.u32 %v792, 2147483648
    %v1220 = vxor.u32 %v932, 2147483648
    %v1221 = vxor.u32 %v934, 2147483648
    %v1222 = vxor.u32 %v1074, 2147483648
    %v1223 = vxor.u32 %v1076, 2147483648
    %v1224 = vxor.u32 %v1215, 2147483648
    %v1225 = vmul.f32 %v1218, 1.442695
    %v1226 = vpow.pop %v1225
    %v1227 = vmul.f32 %v1219, 1.442695
    %v1228 = vpow.pop %v1227
    %v1229 = vmul.f32 %v1220, 1.442695
    %v1230 = vpow.pop %v1229
    %v1231 = vmul.f32 %v1221, 1.442695
    %v1232 = vpow.pop %v1231
    %v1233 = vmul.f32 %v1222, 1.442695
    %v1234 = vpow.pop %v1233
    %v1235 = vmul.f32 %v1223, 1.442695
    %v1236 = vpow.pop %v1235
    %v1237 = vmul.f32 %v1224, 1.442695
    %v1238 = vpow.pop %v1237
    %v1239 = vadd.f32 %v1226, 1.0
    %v1240 = vadd.f32 %v1228, 1.0
    %v1241 = vadd.f32 %v1230, 1.0
    %v1242 = vadd.f32 %v1232, 1.0
    %v1243 = vadd.f32 %v1234, 1.0
    %v1244 = vadd.f32 %v1236, 1.0
    %v1245 = vadd.f32 %v1238, 1.0
    %v1246 = vrcp.pop %v1239
    %v1247 = vmul.f32 1.0, %v1246
    %v1248 = vrcp.pop %v1240
    %v1249 = vmul.f32 1.0, %v1248
    %v1250 = vrcp.pop %v1241
    %v1251 = vmul.f32 1.0, %v1250
    %v1252 = vrcp.pop %v1242
    %v1253 = vmul.f32 1.0, %v1252
    %v1254 = vrcp.pop %v1243
    %v1255 = vmul.f32 1.0, %v1254
    %v1256 = vrcp.pop %v1244
    %v1257 = vmul.f32 1.0, %v1256
    %v1258 = vrcp.pop %v1245
    %v1259 = vmul.f32 1.0, %v1258
    %1260 = vst [vmem:[#allocation10] sm:$0xff] %v1247
    %1261 = vst [vmem:[#allocation10 + $0x8] sm:$0xff] %v1249
    %1262 = vst [vmem:[#allocation10 + $0x10] sm:$0xff] %v1251
    %1263 = vst [vmem:[#allocation10 + $0x18] sm:$0xff] %v1253
    %1264 = vst [vmem:[#allocation10 + $0x20] sm:$0xff] %v1255
    %1265 = vst [vmem:[#allocation10 + $0x28] sm:$0xff] %v1257
    %1266 = vst [vmem:[#allocation10 + $0x30] sm:$0xff] %v1259
    // Predicated region
    $region38: #{tpu_custom_call.1} parent=1 // pred_check
      _
    $region39: #{tpu_custom_call.1} parent=1 // pred_check_branch
      %1268 = sbr.rel (0) target = $region41
    $region40: #{tpu_custom_call.1} parent=1 // pred_region
      %s1270 = ssub.s32 896, 896
      %1271 = vsyncadd [#allocation4], %s1270
      %s1273 = sshll.u32 [#allocation10], 4
      %s1274 = int_to_ptr.vmem [resolvable:$true] %s1273
      %1276 = dma.vmem_to_hbm [thread:$0]  %s1274, 896, %s5, [#allocation4]
    $region41: #{tpu_custom_call.1} parent=1 // pred_fallthru
      _
    // Predicated region
    $region42: #{tpu_custom_call.1} parent=1 // pred_check
      _
    $region43: #{tpu_custom_call.1} parent=1 // pred_check_branch
      %1278 = sbr.rel (0) target = $region45
    $region44: #{tpu_custom_call.1} parent=1 // pred_region
      %1279 = dma.done [#allocation4], 896
    $region45: #{tpu_custom_call.1} parent=1 // pred_fallthru
      _
    %1280 = vsyncpa [#allocation3], 1
    %1281 = vsyncpa [#allocation6], 1
    %1282 = vsyncpa [#allocation9], 1
    %1283 = vsyncpa [#allocation4], 1

</llo_original>
